<compile_context>
chip_gen: v6e
topology: v6e:2x2x1
jax: 0.10.0
libtpu: 0.0.40
codegen_flags: <defaults>
</compile_context>

<pallas_src>
import jax
import jax.numpy as jnp
from jax.experimental import pallas as pl
from jax.experimental.pallas import tpu as pltpu

INPUT_SIZE = 9   # len(X_labels)
HIDDEN = 48
HP = 128         # per-gate padded width: one full 128-lane vreg
FC1 = 16
OUT = 4


def lstm_model_kernel(x2d_ref, w_ih_ref, w_hh_ref, b_ref,
                      w_fc_ref, b_fc_ref, w_fc2_ref, b_fc2_ref,
                      out_ref, xp_ref):
    """Whole forward pass in one kernel invocation (everything fits in VMEM).

    x2d_ref  : (T*B, I)     time-major input, flattened to 2-D
    w_ih_ref : (I, 4*HP)    input->hidden weights, each gate padded 48 -> 128 lanes
    w_hh_ref : (HP, 4*HP)   hidden->hidden weights, rows and gate cols padded
    b_ref    : (1, 4*HP)    b_ih + b_hh, gate-padded
    w_fc_ref : (HP, FC1), b_fc_ref : (1, FC1)
    w_fc2_ref: (FC1, OUT), b_fc2_ref: (1, OUT)
    out_ref  : (B, OUT)
    xp_ref   : (T*B, 4*HP)  VMEM scratch holding the precomputed input projection
    """
    B = out_ref.shape[0]
    TB = x2d_ref.shape[0]
    T = TB // B

    # One batched matmul for the whole input projection; bias folded in here so
    # the recurrent loop never re-broadcasts it.
    xp_ref[...] = (jnp.dot(x2d_ref[...], w_ih_ref[...],
                           preferred_element_type=jnp.float32)
                   + b_ref[...])

    w_hh = w_hh_ref[...]

    def step(t, carry):
        h, c = carry
        gates = (xp_ref[pl.ds(t * B, B), :]
                 + jnp.dot(h, w_hh, preferred_element_type=jnp.float32))  # (B, 4*HP)
        # 128-aligned gate slices (free vreg selection). PyTorch order: i, f, g, o.
        i = jax.nn.sigmoid(gates[:, 0 * HP:1 * HP])
        f = jax.nn.sigmoid(gates[:, 1 * HP:2 * HP])
        g = jnp.tanh(gates[:, 2 * HP:3 * HP])
        o = jax.nn.sigmoid(gates[:, 3 * HP:4 * HP])
        c_new = f * c + i * g
        h_new = o * jnp.tanh(c_new)
        return (h_new, c_new)

    h0 = jnp.zeros((B, HP), jnp.float32)
    c0 = jnp.zeros((B, HP), jnp.float32)
    h, _c = jax.lax.fori_loop(0, T, step, (h0, c0), unroll=min(T, 8))

    # Head: ReLU -> (dropout = identity, eval) -> fc -> ReLU -> (dropout) -> fc2.
    # Padded lanes of h are exactly zero and padded rows of w_fc are zero, so no
    # masking of the padded hidden lanes is needed.
    hn = jnp.maximum(h, 0.0)
    z = jnp.dot(hn, w_fc_ref[...], preferred_element_type=jnp.float32) + b_fc_ref[...]
    z = jnp.maximum(z, 0.0)
    out = jnp.dot(z, w_fc2_ref[...], preferred_element_type=jnp.float32) + b_fc2_ref[...]
    out_ref[...] = out.astype(out_ref.dtype)


def init_params(key):
    """Deterministic parameter init matching the PyTorch module's shapes."""
    ks = jax.random.split(key, 8)
    k_lstm = 1.0 / jnp.sqrt(jnp.float32(HIDDEN))
    k_fc = 1.0 / jnp.sqrt(jnp.float32(HIDDEN))
    k_fc2 = 1.0 / jnp.sqrt(jnp.float32(FC1))

    def u(k, shape, bound):
        return jax.random.uniform(k, shape, jnp.float32, -bound, bound)

    return {
        "w_ih": u(ks[0], (4 * HIDDEN, INPUT_SIZE), k_lstm),   # PyTorch layout (4H, I)
        "w_hh": u(ks[1], (4 * HIDDEN, HIDDEN), k_lstm),       # (4H, H)
        "b_ih": u(ks[2], (4 * HIDDEN,), k_lstm),
        "b_hh": u(ks[3], (4 * HIDDEN,), k_lstm),
        "w_fc": u(ks[4], (FC1, HIDDEN), k_fc),                # (16, 48)
        "b_fc": u(ks[5], (FC1,), k_fc),
        "w_fc2": u(ks[6], (OUT, FC1), k_fc2),                 # (4, 16)
        "b_fc2": u(ks[7], (OUT,), k_fc2),
    }


def _pad_gate_cols(w):
    """(rows, 4*HIDDEN) -> (rows, 4*HP): pad each 48-wide gate block to 128 lanes."""
    rows = w.shape[0]
    w4 = w.reshape(rows, 4, HIDDEN)
    wp = jnp.zeros((rows, 4, HP), jnp.float32).at[:, :, :HIDDEN].set(w4)
    return wp.reshape(rows, 4 * HP)


def lstm_model_forward(x, params):
    """x: (B, T, INPUT_SIZE), batch_first like the PyTorch module. Returns (B, 4)."""
    B, T, I = x.shape
    assert I == INPUT_SIZE

    # Glue: layout plumbing / pre-transposition + gate padding (plain JAX).
    x_tm = jnp.transpose(x, (1, 0, 2)).astype(jnp.float32)            # (T, B, I)
    x2d = x_tm.reshape(T * B, I)                                      # (T*B, I)

    w_ih_t = jnp.transpose(params["w_ih"]).astype(jnp.float32)        # (I, 4H)
    w_hh_t = jnp.transpose(params["w_hh"]).astype(jnp.float32)        # (H, 4H)
    b = (params["b_ih"] + params["b_hh"]).reshape(1, 4 * HIDDEN).astype(jnp.float32)

    w_ih_p = _pad_gate_cols(w_ih_t)                                   # (I, 4*HP)
    w_hh_p = (jnp.zeros((HP, 4 * HP), jnp.float32)
              .at[:HIDDEN, :].set(_pad_gate_cols(w_hh_t)))            # (HP, 4*HP)
    b_p = _pad_gate_cols(b)                                           # (1, 4*HP)

    w_fc_p = (jnp.zeros((HP, FC1), jnp.float32)
              .at[:HIDDEN, :].set(jnp.transpose(params["w_fc"]).astype(jnp.float32)))
    b_fc = params["b_fc"].reshape(1, FC1).astype(jnp.float32)
    w_fc2_t = jnp.transpose(params["w_fc2"]).astype(jnp.float32)      # (16, 4)
    b_fc2 = params["b_fc2"].reshape(1, OUT).astype(jnp.float32)

    vmem = pl.BlockSpec(memory_space=pltpu.MemorySpace.VMEM)
    out = pl.pallas_call(
        lstm_model_kernel,
        out_shape=jax.ShapeDtypeStruct((B, OUT), jnp.float32),
        in_specs=[vmem] * 8,
        out_specs=vmem,
        scratch_shapes=[pltpu.VMEM((T * B, 4 * HP), jnp.float32)],
    )(x2d, w_ih_p, w_hh_p, b_p, w_fc_p, b_fc, w_fc2_t, b_fc2)
    return out


def reference_forward(x, params):
    """Pure-JAX reference (f32) of the PyTorch eval-mode forward."""
    B, T, _ = x.shape
    hp = jax.lax.Precision.HIGHEST
    w_ih = params["w_ih"].astype(jnp.float32)
    w_hh = params["w_hh"].astype(jnp.float32)
    b = (params["b_ih"] + params["b_hh"]).astype(jnp.float32)
    h = jnp.zeros((B, HIDDEN), jnp.float32)
    c = jnp.zeros((B, HIDDEN), jnp.float32)
    for t in range(T):
        g = (jnp.dot(x[:, t, :].astype(jnp.float32), w_ih.T, precision=hp)
             + jnp.dot(h, w_hh.T, precision=hp) + b)
        i = jax.nn.sigmoid(g[:, 0 * HIDDEN:1 * HIDDEN])
        f = jax.nn.sigmoid(g[:, 1 * HIDDEN:2 * HIDDEN])
        gg = jnp.tanh(g[:, 2 * HIDDEN:3 * HIDDEN])
        o = jax.nn.sigmoid(g[:, 3 * HIDDEN:4 * HIDDEN])
        c = f * c + i * gg
        h = o * jnp.tanh(c)
    hn = jnp.maximum(h, 0.0)
    z = jnp.maximum(
        jnp.dot(hn, params["w_fc"].T.astype(jnp.float32), precision=hp) + params["b_fc"], 0.0)
    return jnp.dot(z, params["w_fc2"].T.astype(jnp.float32), precision=hp) + params["b_fc2"]


if __name__ == "__main__":
    key = jax.random.PRNGKey(0)
    k_params, k_x = jax.random.split(key)

    B, T = 2, 8
    params = init_params(k_params)
    x = jax.random.normal(k_x, (B, T, INPUT_SIZE), jnp.float32)

    y = lstm_model_forward(x, params)
    jax.block_until_ready(y)
    assert y.shape == (B, OUT)

    y_ref = reference_forward(x, params)
    assert jnp.allclose(y, y_ref, atol=1e-2, rtol=1e-2), "kernel/reference mismatch"

    print("KERNEL_OK")
</pallas_src>

<mosaic_0001>
module attributes {stable_mosaic.version = 11 : i64} {
  func.func @lstm_model_kernel(%arg0: memref<16x9xf32, #tpu.memory_space<vmem>>, %arg1: memref<9x512xf32, #tpu.memory_space<vmem>>, %arg2: memref<128x512xf32, #tpu.memory_space<vmem>>, %arg3: memref<1x512xf32, #tpu.memory_space<vmem>>, %arg4: memref<128x16xf32, #tpu.memory_space<vmem>>, %arg5: memref<1x16xf32, #tpu.memory_space<vmem>>, %arg6: memref<16x4xf32, #tpu.memory_space<vmem>>, %arg7: memref<1x4xf32, #tpu.memory_space<vmem>>, %arg8: memref<2x4xf32, #tpu.memory_space<vmem>>, %arg9: memref<16x512xf32, #tpu.memory_space<vmem>>) attributes {dimension_semantics = [], scalar_prefetch = 0 : i64, scratch_operands = 1 : i64, tpu.core_type = #tpu.core_type<tc>} {
    %c0 = arith.constant 0 : index
    %c0_0 = arith.constant 0 : index
    %0 = vector.load %arg0[%c0, %c0_0] : memref<16x9xf32, #tpu.memory_space<vmem>>, vector<16x9xf32>
    %c0_1 = arith.constant 0 : index
    %c0_2 = arith.constant 0 : index
    %1 = vector.load %arg1[%c0_1, %c0_2] : memref<9x512xf32, #tpu.memory_space<vmem>>, vector<9x512xf32>
    %cst = arith.constant dense<0.000000e+00> : vector<16x512xf32>
    %2 = tpu.matmul %0, %1, %cst {dimension_numbers = #tpu.dot_dimension_numbers<[1], [0], [0], [1], [0, 0, 1, 1], [], []>} : vector<16x9xf32>, vector<9x512xf32>, vector<16x512xf32> -> vector<16x512xf32>
    %c0_3 = arith.constant 0 : index
    %c0_4 = arith.constant 0 : index
    %3 = vector.load %arg3[%c0_3, %c0_4] : memref<1x512xf32, #tpu.memory_space<vmem>>, vector<1x512xf32>
    %4 = vector.broadcast %3 : vector<1x512xf32> to vector<16x512xf32>
    %5 = arith.addf %2, %4 : vector<16x512xf32>
    %c0_5 = arith.constant 0 : index
    %c0_6 = arith.constant 0 : index
    %6 = vector.load %arg9[%c0_5, %c0_6] : memref<16x512xf32, #tpu.memory_space<vmem>>, vector<16x512xf32>
    tpu.vector_store %arg9[%c0_5, %c0_6], %5 {strides = array<i32>} : memref<16x512xf32, #tpu.memory_space<vmem>>, vector<16x512xf32>,
    %c0_7 = arith.constant 0 : index
    %c0_8 = arith.constant 0 : index
    %7 = vector.load %arg2[%c0_7, %c0_8] : memref<128x512xf32, #tpu.memory_space<vmem>>, vector<128x512xf32>
    %cst_9 = arith.constant 0.000000e+00 : f32
    %8 = vector.broadcast %cst_9 : f32 to vector<2x128xf32>
    %cst_10 = arith.constant 0.000000e+00 : f32
    %9 = vector.broadcast %cst_10 : f32 to vector<2x128xf32>
    %c0_i32 = arith.constant 0 : i32
    %c2_i32 = arith.constant 2 : i32
    %10 = arith.muli %c0_i32, %c2_i32 : i32
    %11 = arith.index_cast %10 : i32 to index
    %c0_11 = arith.constant 0 : index
    %12 = vector.load %arg9[%11, %c0_11] : memref<16x512xf32, #tpu.memory_space<vmem>>, vector<2x512xf32>
    %cst_12 = arith.constant dense<0.000000e+00> : vector<2x512xf32>
    %13 = tpu.matmul %8, %7, %cst_12 {dimension_numbers = #tpu.dot_dimension_numbers<[1], [0], [0], [1], [0, 0, 1, 1], [], []>} : vector<2x128xf32>, vector<128x512xf32>, vector<2x512xf32> -> vector<2x512xf32>
    %14 = arith.addf %12, %13 : vector<2x512xf32>
    %15 = vector.extract_strided_slice %14 {offsets = [0, 0], sizes = [2, 128], strides = [1, 1]} : vector<2x512xf32> to vector<2x128xf32>
    %16 = arith.negf %15 : vector<2x128xf32>
    %17 = math.exp %16 : vector<2x128xf32>
    %cst_13 = arith.constant 1.000000e+00 : f32
    %18 = vector.broadcast %cst_13 : f32 to vector<2x128xf32>
    %19 = arith.addf %18, %17 : vector<2x128xf32>
    %20 = arith.divf %18, %19 : vector<2x128xf32>
    %21 = vector.extract_strided_slice %14 {offsets = [0, 128], sizes = [2, 128], strides = [1, 1]} : vector<2x512xf32> to vector<2x128xf32>
    %22 = arith.negf %21 : vector<2x128xf32>
    %23 = math.exp %22 : vector<2x128xf32>
    %cst_14 = arith.constant 1.000000e+00 : f32
    %24 = vector.broadcast %cst_14 : f32 to vector<2x128xf32>
    %25 = arith.addf %24, %23 : vector<2x128xf32>
    %26 = arith.divf %24, %25 : vector<2x128xf32>
    %27 = vector.extract_strided_slice %14 {offsets = [0, 256], sizes = [2, 128], strides = [1, 1]} : vector<2x512xf32> to vector<2x128xf32>
    %28 = math.tanh %27 : vector<2x128xf32>
    %29 = vector.extract_strided_slice %14 {offsets = [0, 384], sizes = [2, 128], strides = [1, 1]} : vector<2x512xf32> to vector<2x128xf32>
    %30 = arith.negf %29 : vector<2x128xf32>
    %31 = math.exp %30 : vector<2x128xf32>
    %cst_15 = arith.constant 1.000000e+00 : f32
    %32 = vector.broadcast %cst_15 : f32 to vector<2x128xf32>
    %33 = arith.addf %32, %31 : vector<2x128xf32>
    %34 = arith.divf %32, %33 : vector<2x128xf32>
    %35 = arith.mulf %26, %9 : vector<2x128xf32>
    %36 = arith.mulf %20, %28 : vector<2x128xf32>
    %37 = arith.addf %35, %36 : vector<2x128xf32>
    %38 = math.tanh %37 : vector<2x128xf32>
    %39 = arith.mulf %34, %38 : vector<2x128xf32>
    %c1_i32 = arith.constant 1 : i32
    %c2_i32_16 = arith.constant 2 : i32
    %40 = arith.muli %c1_i32, %c2_i32_16 : i32
    %41 = arith.index_cast %40 : i32 to index
    %c0_17 = arith.constant 0 : index
    %42 = vector.load %arg9[%41, %c0_17] : memref<16x512xf32, #tpu.memory_space<vmem>>, vector<2x512xf32>
    %cst_18 = arith.constant dense<0.000000e+00> : vector<2x512xf32>
    %43 = tpu.matmul %39, %7, %cst_18 {dimension_numbers = #tpu.dot_dimension_numbers<[1], [0], [0], [1], [0, 0, 1, 1], [], []>} : vector<2x128xf32>, vector<128x512xf32>, vector<2x512xf32> -> vector<2x512xf32>
    %44 = arith.addf %42, %43 : vector<2x512xf32>
    %45 = vector.extract_strided_slice %44 {offsets = [0, 0], sizes = [2, 128], strides = [1, 1]} : vector<2x512xf32> to vector<2x128xf32>
    %46 = arith.negf %45 : vector<2x128xf32>
    %47 = math.exp %46 : vector<2x128xf32>
    %cst_19 = arith.constant 1.000000e+00 : f32
    %48 = vector.broadcast %cst_19 : f32 to vector<2x128xf32>
    %49 = arith.addf %48, %47 : vector<2x128xf32>
    %50 = arith.divf %48, %49 : vector<2x128xf32>
    %51 = vector.extract_strided_slice %44 {offsets = [0, 128], sizes = [2, 128], strides = [1, 1]} : vector<2x512xf32> to vector<2x128xf32>
    %52 = arith.negf %51 : vector<2x128xf32>
    %53 = math.exp %52 : vector<2x128xf32>
    %cst_20 = arith.constant 1.000000e+00 : f32
    %54 = vector.broadcast %cst_20 : f32 to vector<2x128xf32>
    %55 = arith.addf %54, %53 : vector<2x128xf32>
    %56 = arith.divf %54, %55 : vector<2x128xf32>
    %57 = vector.extract_strided_slice %44 {offsets = [0, 256], sizes = [2, 128], strides = [1, 1]} : vector<2x512xf32> to vector<2x128xf32>
    %58 = math.tanh %57 : vector<2x128xf32>
    %59 = vector.extract_strided_slice %44 {offsets = [0, 384], sizes = [2, 128], strides = [1, 1]} : vector<2x512xf32> to vector<2x128xf32>
    %60 = arith.negf %59 : vector<2x128xf32>
    %61 = math.exp %60 : vector<2x128xf32>
    %cst_21 = arith.constant 1.000000e+00 : f32
    %62 = vector.broadcast %cst_21 : f32 to vector<2x128xf32>
    %63 = arith.addf %62, %61 : vector<2x128xf32>
    %64 = arith.divf %62, %63 : vector<2x128xf32>
    %65 = arith.mulf %56, %37 : vector<2x128xf32>
    %66 = arith.mulf %50, %58 : vector<2x128xf32>
    %67 = arith.addf %65, %66 : vector<2x128xf32>
    %68 = math.tanh %67 : vector<2x128xf32>
    %69 = arith.mulf %64, %68 : vector<2x128xf32>
    %c2_i32_22 = arith.constant 2 : i32
    %c2_i32_23 = arith.constant 2 : i32
    %70 = arith.muli %c2_i32_22, %c2_i32_23 : i32
    %71 = arith.index_cast %70 : i32 to index
    %c0_24 = arith.constant 0 : index
    %72 = vector.load %arg9[%71, %c0_24] : memref<16x512xf32, #tpu.memory_space<vmem>>, vector<2x512xf32>
    %cst_25 = arith.constant dense<0.000000e+00> : vector<2x512xf32>
    %73 = tpu.matmul %69, %7, %cst_25 {dimension_numbers = #tpu.dot_dimension_numbers<[1], [0], [0], [1], [0, 0, 1, 1], [], []>} : vector<2x128xf32>, vector<128x512xf32>, vector<2x512xf32> -> vector<2x512xf32>
    %74 = arith.addf %72, %73 : vector<2x512xf32>
    %75 = vector.extract_strided_slice %74 {offsets = [0, 0], sizes = [2, 128], strides = [1, 1]} : vector<2x512xf32> to vector<2x128xf32>
    %76 = arith.negf %75 : vector<2x128xf32>
    %77 = math.exp %76 : vector<2x128xf32>
    %cst_26 = arith.constant 1.000000e+00 : f32
    %78 = vector.broadcast %cst_26 : f32 to vector<2x128xf32>
    %79 = arith.addf %78, %77 : vector<2x128xf32>
    %80 = arith.divf %78, %79 : vector<2x128xf32>
    %81 = vector.extract_strided_slice %74 {offsets = [0, 128], sizes = [2, 128], strides = [1, 1]} : vector<2x512xf32> to vector<2x128xf32>
    %82 = arith.negf %81 : vector<2x128xf32>
    %83 = math.exp %82 : vector<2x128xf32>
    %cst_27 = arith.constant 1.000000e+00 : f32
    %84 = vector.broadcast %cst_27 : f32 to vector<2x128xf32>
    %85 = arith.addf %84, %83 : vector<2x128xf32>
    %86 = arith.divf %84, %85 : vector<2x128xf32>
    %87 = vector.extract_strided_slice %74 {offsets = [0, 256], sizes = [2, 128], strides = [1, 1]} : vector<2x512xf32> to vector<2x128xf32>
    %88 = math.tanh %87 : vector<2x128xf32>
    %89 = vector.extract_strided_slice %74 {offsets = [0, 384], sizes = [2, 128], strides = [1, 1]} : vector<2x512xf32> to vector<2x128xf32>
    %90 = arith.negf %89 : vector<2x128xf32>
    %91 = math.exp %90 : vector<2x128xf32>
    %cst_28 = arith.constant 1.000000e+00 : f32
    %92 = vector.broadcast %cst_28 : f32 to vector<2x128xf32>
    %93 = arith.addf %92, %91 : vector<2x128xf32>
    %94 = arith.divf %92, %93 : vector<2x128xf32>
    %95 = arith.mulf %86, %67 : vector<2x128xf32>
    %96 = arith.mulf %80, %88 : vector<2x128xf32>
    %97 = arith.addf %95, %96 : vector<2x128xf32>
    %98 = math.tanh %97 : vector<2x128xf32>
    %99 = arith.mulf %94, %98 : vector<2x128xf32>
    %c3_i32 = arith.constant 3 : i32
    %c2_i32_29 = arith.constant 2 : i32
    %100 = arith.muli %c3_i32, %c2_i32_29 : i32
    %101 = arith.index_cast %100 : i32 to index
    %c0_30 = arith.constant 0 : index
    %102 = vector.load %arg9[%101, %c0_30] : memref<16x512xf32, #tpu.memory_space<vmem>>, vector<2x512xf32>
    %cst_31 = arith.constant dense<0.000000e+00> : vector<2x512xf32>
    %103 = tpu.matmul %99, %7, %cst_31 {dimension_numbers = #tpu.dot_dimension_numbers<[1], [0], [0], [1], [0, 0, 1, 1], [], []>} : vector<2x128xf32>, vector<128x512xf32>, vector<2x512xf32> -> vector<2x512xf32>
    %104 = arith.addf %102, %103 : vector<2x512xf32>
    %105 = vector.extract_strided_slice %104 {offsets = [0, 0], sizes = [2, 128], strides = [1, 1]} : vector<2x512xf32> to vector<2x128xf32>
    %106 = arith.negf %105 : vector<2x128xf32>
    %107 = math.exp %106 : vector<2x128xf32>
    %cst_32 = arith.constant 1.000000e+00 : f32
    %108 = vector.broadcast %cst_32 : f32 to vector<2x128xf32>
    %109 = arith.addf %108, %107 : vector<2x128xf32>
    %110 = arith.divf %108, %109 : vector<2x128xf32>
    %111 = vector.extract_strided_slice %104 {offsets = [0, 128], sizes = [2, 128], strides = [1, 1]} : vector<2x512xf32> to vector<2x128xf32>
    %112 = arith.negf %111 : vector<2x128xf32>
    %113 = math.exp %112 : vector<2x128xf32>
    %cst_33 = arith.constant 1.000000e+00 : f32
    %114 = vector.broadcast %cst_33 : f32 to vector<2x128xf32>
    %115 = arith.addf %114, %113 : vector<2x128xf32>
    %116 = arith.divf %114, %115 : vector<2x128xf32>
    %117 = vector.extract_strided_slice %104 {offsets = [0, 256], sizes = [2, 128], strides = [1, 1]} : vector<2x512xf32> to vector<2x128xf32>
    %118 = math.tanh %117 : vector<2x128xf32>
    %119 = vector.extract_strided_slice %104 {offsets = [0, 384], sizes = [2, 128], strides = [1, 1]} : vector<2x512xf32> to vector<2x128xf32>
    %120 = arith.negf %119 : vector<2x128xf32>
    %121 = math.exp %120 : vector<2x128xf32>
    %cst_34 = arith.constant 1.000000e+00 : f32
    %122 = vector.broadcast %cst_34 : f32 to vector<2x128xf32>
    %123 = arith.addf %122, %121 : vector<2x128xf32>
    %124 = arith.divf %122, %123 : vector<2x128xf32>
    %125 = arith.mulf %116, %97 : vector<2x128xf32>
    %126 = arith.mulf %110, %118 : vector<2x128xf32>
    %127 = arith.addf %125, %126 : vector<2x128xf32>
    %128 = math.tanh %127 : vector<2x128xf32>
    %129 = arith.mulf %124, %128 : vector<2x128xf32>
    %c4_i32 = arith.constant 4 : i32
    %c2_i32_35 = arith.constant 2 : i32
    %130 = arith.muli %c4_i32, %c2_i32_35 : i32
    %131 = arith.index_cast %130 : i32 to index
    %c0_36 = arith.constant 0 : index
    %132 = vector.load %arg9[%131, %c0_36] : memref<16x512xf32, #tpu.memory_space<vmem>>, vector<2x512xf32>
    %cst_37 = arith.constant dense<0.000000e+00> : vector<2x512xf32>
    %133 = tpu.matmul %129, %7, %cst_37 {dimension_numbers = #tpu.dot_dimension_numbers<[1], [0], [0], [1], [0, 0, 1, 1], [], []>} : vector<2x128xf32>, vector<128x512xf32>, vector<2x512xf32> -> vector<2x512xf32>
    %134 = arith.addf %132, %133 : vector<2x512xf32>
    %135 = vector.extract_strided_slice %134 {offsets = [0, 0], sizes = [2, 128], strides = [1, 1]} : vector<2x512xf32> to vector<2x128xf32>
    %136 = arith.negf %135 : vector<2x128xf32>
    %137 = math.exp %136 : vector<2x128xf32>
    %cst_38 = arith.constant 1.000000e+00 : f32
    %138 = vector.broadcast %cst_38 : f32 to vector<2x128xf32>
    %139 = arith.addf %138, %137 : vector<2x128xf32>
    %140 = arith.divf %138, %139 : vector<2x128xf32>
    %141 = vector.extract_strided_slice %134 {offsets = [0, 128], sizes = [2, 128], strides = [1, 1]} : vector<2x512xf32> to vector<2x128xf32>
    %142 = arith.negf %141 : vector<2x128xf32>
    %143 = math.exp %142 : vector<2x128xf32>
    %cst_39 = arith.constant 1.000000e+00 : f32
    %144 = vector.broadcast %cst_39 : f32 to vector<2x128xf32>
    %145 = arith.addf %144, %143 : vector<2x128xf32>
    %146 = arith.divf %144, %145 : vector<2x128xf32>
    %147 = vector.extract_strided_slice %134 {offsets = [0, 256], sizes = [2, 128], strides = [1, 1]} : vector<2x512xf32> to vector<2x128xf32>
    %148 = math.tanh %147 : vector<2x128xf32>
    %149 = vector.extract_strided_slice %134 {offsets = [0, 384], sizes = [2, 128], strides = [1, 1]} : vector<2x512xf32> to vector<2x128xf32>
    %150 = arith.negf %149 : vector<2x128xf32>
    %151 = math.exp %150 : vector<2x128xf32>
    %cst_40 = arith.constant 1.000000e+00 : f32
    %152 = vector.broadcast %cst_40 : f32 to vector<2x128xf32>
    %153 = arith.addf %152, %151 : vector<2x128xf32>
    %154 = arith.divf %152, %153 : vector<2x128xf32>
    %155 = arith.mulf %146, %127 : vector<2x128xf32>
    %156 = arith.mulf %140, %148 : vector<2x128xf32>
    %157 = arith.addf %155, %156 : vector<2x128xf32>
    %158 = math.tanh %157 : vector<2x128xf32>
    %159 = arith.mulf %154, %158 : vector<2x128xf32>
    %c5_i32 = arith.constant 5 : i32
    %c2_i32_41 = arith.constant 2 : i32
    %160 = arith.muli %c5_i32, %c2_i32_41 : i32
    %161 = arith.index_cast %160 : i32 to index
    %c0_42 = arith.constant 0 : index
    %162 = vector.load %arg9[%161, %c0_42] : memref<16x512xf32, #tpu.memory_space<vmem>>, vector<2x512xf32>
    %cst_43 = arith.constant dense<0.000000e+00> : vector<2x512xf32>
    %163 = tpu.matmul %159, %7, %cst_43 {dimension_numbers = #tpu.dot_dimension_numbers<[1], [0], [0], [1], [0, 0, 1, 1], [], []>} : vector<2x128xf32>, vector<128x512xf32>, vector<2x512xf32> -> vector<2x512xf32>
    %164 = arith.addf %162, %163 : vector<2x512xf32>
    %165 = vector.extract_strided_slice %164 {offsets = [0, 0], sizes = [2, 128], strides = [1, 1]} : vector<2x512xf32> to vector<2x128xf32>
    %166 = arith.negf %165 : vector<2x128xf32>
    %167 = math.exp %166 : vector<2x128xf32>
    %cst_44 = arith.constant 1.000000e+00 : f32
    %168 = vector.broadcast %cst_44 : f32 to vector<2x128xf32>
    %169 = arith.addf %168, %167 : vector<2x128xf32>
    %170 = arith.divf %168, %169 : vector<2x128xf32>
    %171 = vector.extract_strided_slice %164 {offsets = [0, 128], sizes = [2, 128], strides = [1, 1]} : vector<2x512xf32> to vector<2x128xf32>
    %172 = arith.negf %171 : vector<2x128xf32>
    %173 = math.exp %172 : vector<2x128xf32>
    %cst_45 = arith.constant 1.000000e+00 : f32
    %174 = vector.broadcast %cst_45 : f32 to vector<2x128xf32>
    %175 = arith.addf %174, %173 : vector<2x128xf32>
    %176 = arith.divf %174, %175 : vector<2x128xf32>
    %177 = vector.extract_strided_slice %164 {offsets = [0, 256], sizes = [2, 128], strides = [1, 1]} : vector<2x512xf32> to vector<2x128xf32>
    %178 = math.tanh %177 : vector<2x128xf32>
    %179 = vector.extract_strided_slice %164 {offsets = [0, 384], sizes = [2, 128], strides = [1, 1]} : vector<2x512xf32> to vector<2x128xf32>
    %180 = arith.negf %179 : vector<2x128xf32>
    %181 = math.exp %180 : vector<2x128xf32>
    %cst_46 = arith.constant 1.000000e+00 : f32
    %182 = vector.broadcast %cst_46 : f32 to vector<2x128xf32>
    %183 = arith.addf %182, %181 : vector<2x128xf32>
    %184 = arith.divf %182, %183 : vector<2x128xf32>
    %185 = arith.mulf %176, %157 : vector<2x128xf32>
    %186 = arith.mulf %170, %178 : vector<2x128xf32>
    %187 = arith.addf %185, %186 : vector<2x128xf32>
    %188 = math.tanh %187 : vector<2x128xf32>
    %189 = arith.mulf %184, %188 : vector<2x128xf32>
    %c6_i32 = arith.constant 6 : i32
    %c2_i32_47 = arith.constant 2 : i32
    %190 = arith.muli %c6_i32, %c2_i32_47 : i32
    %191 = arith.index_cast %190 : i32 to index
    %c0_48 = arith.constant 0 : index
    %192 = vector.load %arg9[%191, %c0_48] : memref<16x512xf32, #tpu.memory_space<vmem>>, vector<2x512xf32>
    %cst_49 = arith.constant dense<0.000000e+00> : vector<2x512xf32>
    %193 = tpu.matmul %189, %7, %cst_49 {dimension_numbers = #tpu.dot_dimension_numbers<[1], [0], [0], [1], [0, 0, 1, 1], [], []>} : vector<2x128xf32>, vector<128x512xf32>, vector<2x512xf32> -> vector<2x512xf32>
    %194 = arith.addf %192, %193 : vector<2x512xf32>
    %195 = vector.extract_strided_slice %194 {offsets = [0, 0], sizes = [2, 128], strides = [1, 1]} : vector<2x512xf32> to vector<2x128xf32>
    %196 = arith.negf %195 : vector<2x128xf32>
    %197 = math.exp %196 : vector<2x128xf32>
    %cst_50 = arith.constant 1.000000e+00 : f32
    %198 = vector.broadcast %cst_50 : f32 to vector<2x128xf32>
    %199 = arith.addf %198, %197 : vector<2x128xf32>
    %200 = arith.divf %198, %199 : vector<2x128xf32>
    %201 = vector.extract_strided_slice %194 {offsets = [0, 128], sizes = [2, 128], strides = [1, 1]} : vector<2x512xf32> to vector<2x128xf32>
    %202 = arith.negf %201 : vector<2x128xf32>
    %203 = math.exp %202 : vector<2x128xf32>
    %cst_51 = arith.constant 1.000000e+00 : f32
    %204 = vector.broadcast %cst_51 : f32 to vector<2x128xf32>
    %205 = arith.addf %204, %203 : vector<2x128xf32>
    %206 = arith.divf %204, %205 : vector<2x128xf32>
    %207 = vector.extract_strided_slice %194 {offsets = [0, 256], sizes = [2, 128], strides = [1, 1]} : vector<2x512xf32> to vector<2x128xf32>
    %208 = math.tanh %207 : vector<2x128xf32>
    %209 = vector.extract_strided_slice %194 {offsets = [0, 384], sizes = [2, 128], strides = [1, 1]} : vector<2x512xf32> to vector<2x128xf32>
    %210 = arith.negf %209 : vector<2x128xf32>
    %211 = math.exp %210 : vector<2x128xf32>
    %cst_52 = arith.constant 1.000000e+00 : f32
    %212 = vector.broadcast %cst_52 : f32 to vector<2x128xf32>
    %213 = arith.addf %212, %211 : vector<2x128xf32>
    %214 = arith.divf %212, %213 : vector<2x128xf32>
    %215 = arith.mulf %206, %187 : vector<2x128xf32>
    %216 = arith.mulf %200, %208 : vector<2x128xf32>
    %217 = arith.addf %215, %216 : vector<2x128xf32>
    %218 = math.tanh %217 : vector<2x128xf32>
    %219 = arith.mulf %214, %218 : vector<2x128xf32>
    %c7_i32 = arith.constant 7 : i32
    %c2_i32_53 = arith.constant 2 : i32
    %220 = arith.muli %c7_i32, %c2_i32_53 : i32
    %221 = arith.index_cast %220 : i32 to index
    %c0_54 = arith.constant 0 : index
    %222 = vector.load %arg9[%221, %c0_54] : memref<16x512xf32, #tpu.memory_space<vmem>>, vector<2x512xf32>
    %cst_55 = arith.constant dense<0.000000e+00> : vector<2x512xf32>
    %223 = tpu.matmul %219, %7, %cst_55 {dimension_numbers = #tpu.dot_dimension_numbers<[1], [0], [0], [1], [0, 0, 1, 1], [], []>} : vector<2x128xf32>, vector<128x512xf32>, vector<2x512xf32> -> vector<2x512xf32>
    %224 = arith.addf %222, %223 : vector<2x512xf32>
    %225 = vector.extract_strided_slice %224 {offsets = [0, 0], sizes = [2, 128], strides = [1, 1]} : vector<2x512xf32> to vector<2x128xf32>
    %226 = arith.negf %225 : vector<2x128xf32>
    %227 = math.exp %226 : vector<2x128xf32>
    %cst_56 = arith.constant 1.000000e+00 : f32
    %228 = vector.broadcast %cst_56 : f32 to vector<2x128xf32>
    %229 = arith.addf %228, %227 : vector<2x128xf32>
    %230 = arith.divf %228, %229 : vector<2x128xf32>
    %231 = vector.extract_strided_slice %224 {offsets = [0, 128], sizes = [2, 128], strides = [1, 1]} : vector<2x512xf32> to vector<2x128xf32>
    %232 = arith.negf %231 : vector<2x128xf32>
    %233 = math.exp %232 : vector<2x128xf32>
    %cst_57 = arith.constant 1.000000e+00 : f32
    %234 = vector.broadcast %cst_57 : f32 to vector<2x128xf32>
    %235 = arith.addf %234, %233 : vector<2x128xf32>
    %236 = arith.divf %234, %235 : vector<2x128xf32>
    %237 = vector.extract_strided_slice %224 {offsets = [0, 256], sizes = [2, 128], strides = [1, 1]} : vector<2x512xf32> to vector<2x128xf32>
    %238 = math.tanh %237 : vector<2x128xf32>
    %239 = vector.extract_strided_slice %224 {offsets = [0, 384], sizes = [2, 128], strides = [1, 1]} : vector<2x512xf32> to vector<2x128xf32>
    %240 = arith.negf %239 : vector<2x128xf32>
    %241 = math.exp %240 : vector<2x128xf32>
    %cst_58 = arith.constant 1.000000e+00 : f32
    %242 = vector.broadcast %cst_58 : f32 to vector<2x128xf32>
    %243 = arith.addf %242, %241 : vector<2x128xf32>
    %244 = arith.divf %242, %243 : vector<2x128xf32>
    %245 = arith.mulf %236, %217 : vector<2x128xf32>
    %246 = arith.mulf %230, %238 : vector<2x128xf32>
    %247 = arith.addf %245, %246 : vector<2x128xf32>
    %248 = math.tanh %247 : vector<2x128xf32>
    %249 = arith.mulf %244, %248 : vector<2x128xf32>
    %c8_i32 = arith.constant 8 : i32
    %cst_59 = arith.constant 0.000000e+00 : f32
    %250 = vector.broadcast %cst_59 : f32 to vector<2x128xf32>
    %251 = arith.maximumf %249, %250 : vector<2x128xf32>
    %c0_60 = arith.constant 0 : index
    %c0_61 = arith.constant 0 : index
    %252 = vector.load %arg4[%c0_60, %c0_61] : memref<128x16xf32, #tpu.memory_space<vmem>>, vector<128x16xf32>
    %cst_62 = arith.constant dense<0.000000e+00> : vector<2x16xf32>
    %253 = tpu.matmul %251, %252, %cst_62 {dimension_numbers = #tpu.dot_dimension_numbers<[1], [0], [0], [1], [0, 0, 1, 1], [], []>} : vector<2x128xf32>, vector<128x16xf32>, vector<2x16xf32> -> vector<2x16xf32>
    %c0_63 = arith.constant 0 : index
    %c0_64 = arith.constant 0 : index
    %254 = vector.load %arg5[%c0_63, %c0_64] : memref<1x16xf32, #tpu.memory_space<vmem>>, vector<1x16xf32>
    %255 = vector.broadcast %254 : vector<1x16xf32> to vector<2x16xf32>
    %256 = arith.addf %253, %255 : vector<2x16xf32>
    %cst_65 = arith.constant 0.000000e+00 : f32
    %257 = vector.broadcast %cst_65 : f32 to vector<2x16xf32>
    %258 = arith.maximumf %256, %257 : vector<2x16xf32>
    %c0_66 = arith.constant 0 : index
    %c0_67 = arith.constant 0 : index
    %259 = vector.load %arg6[%c0_66, %c0_67] : memref<16x4xf32, #tpu.memory_space<vmem>>, vector<16x4xf32>
    %cst_68 = arith.constant dense<0.000000e+00> : vector<2x4xf32>
    %260 = tpu.matmul %258, %259, %cst_68 {dimension_numbers = #tpu.dot_dimension_numbers<[1], [0], [0], [1], [0, 0, 1, 1], [], []>} : vector<2x16xf32>, vector<16x4xf32>, vector<2x4xf32> -> vector<2x4xf32>
    %c0_69 = arith.constant 0 : index
    %c0_70 = arith.constant 0 : index
    %261 = vector.load %arg7[%c0_69, %c0_70] : memref<1x4xf32, #tpu.memory_space<vmem>>, vector<1x4xf32>
    %262 = vector.broadcast %261 : vector<1x4xf32> to vector<2x4xf32>
    %263 = arith.addf %260, %262 : vector<2x4xf32>
    %c0_71 = arith.constant 0 : index
    %c0_72 = arith.constant 0 : index
    %264 = vector.load %arg8[%c0_71, %c0_72] : memref<2x4xf32, #tpu.memory_space<vmem>>, vector<2x4xf32>
    tpu.vector_store %arg8[%c0_71, %c0_72], %263 {strides = array<i32>} : memref<2x4xf32, #tpu.memory_space<vmem>>, vector<2x4xf32>,
    return
  }
}

</mosaic_0001>

<llo_original>
// kernel: tpu_custom_call.1
$region0: #{tpu_custom_call.1}
  #allocation0 [shape = 'u32[]', space=smem, size = 0x4, offset = 0x4, fixed_abs, tag = 'smem constant byte address 0x4 - core index']
  #allocation1 [shape = 'u32[144,128]{1,0:T(1,128)}', space=vmem, size = 0x12000, scoped, tag = 'internal scratch']
  #allocation2 [shape = 'f32[16,512]{1,0:T(8,128)}', space=vmem, size = 0x8000, scoped, tag = 'scratch operand']
  %s0 = inlined_call_operand.vmem [shape: f32[16,9], index: 0, kind: input, shape index: {}]
  %s1 = inlined_call_operand.vmem [shape: f32[9,512], index: 1, kind: input, shape index: {}]
  %s2 = inlined_call_operand.hbm [shape: f32[128,512], index: 2, kind: input, shape index: {}]
  %s3 = inlined_call_operand.vmem [shape: f32[1,512], index: 3, kind: input, shape index: {}]
  %s4 = inlined_call_operand.vmem [shape: f32[128,16], index: 4, kind: input, shape index: {}]
  %s5 = inlined_call_operand.vmem [shape: f32[1,16], index: 5, kind: input, shape index: {}]
  %s6 = inlined_call_operand.vmem [shape: f32[16,4], index: 6, kind: input, shape index: {}]
  %s7 = inlined_call_operand.vmem [shape: f32[1,4], index: 7, kind: input, shape index: {}]
  %s8 = inlined_call_operand.hbm [shape: f32[2,4], index: 8, kind: output, shape index: {}]
  %s9 = sld [smem:[#allocation0]]
  $region46: #{tpu_custom_call.1} parent=0
    _
  %s11 = ssub.s32 1, %s9
  %s12 = scalar_select 0, %s11, %s9
  $region1: #{tpu_custom_call.1} parent=0
    #allocation3 [shape = 'u8[262144]{0}', space=vmem, size = 0x40000, scoped, tag = 'input window, operand 2, single buffered']
    #allocation4 [shape = 's32[1]{0}', space=sflag, size = 0x4, scoped, tag = 'scoped memory for tpu_custom_call.1']
    #allocation5 [shape = 's32[1]{0}', space=sflag, size = 0x4, scoped, tag = 'scoped memory for tpu_custom_call.1']
    #allocation6 [shape = 'u8[1024]{0}', space=vmem, size = 0x400, scoped, tag = 'output window, operand 0, single buffered']
    %13 = vsyncpa [#allocation4], 0
    %14 = vsyncpa [#allocation5], 0
    // Predicated region
    $region2: #{tpu_custom_call.1} parent=1 // pred_check
      _
    $region3: #{tpu_custom_call.1} parent=1 // pred_check_branch
      %16 = sbr.rel (0) target = $region5
    $region4: #{tpu_custom_call.1} parent=1 // pred_region
      _
    $region5: #{tpu_custom_call.1} parent=1 // pred_fallthru
      _
    // Predicated region
    $region6: #{tpu_custom_call.1} parent=1 // pred_check
      _
    $region7: #{tpu_custom_call.1} parent=1 // pred_check_branch
      %18 = sbr.rel (0) target = $region9
    $region8: #{tpu_custom_call.1} parent=1 // pred_region
      _
    $region9: #{tpu_custom_call.1} parent=1 // pred_fallthru
      _
    // Predicated region
    $region10: #{tpu_custom_call.1} parent=1 // pred_check
      _
    $region11: #{tpu_custom_call.1} parent=1 // pred_check_branch
      %20 = sbr.rel (0) target = $region13
    $region12: #{tpu_custom_call.1} parent=1 // pred_region
      %s22 = ssub.s32 8192, 8192
      %23 = vsyncadd [#allocation4], %s22
      %s24 = sshll.u32 [#allocation3], 4
      %s25 = int_to_ptr.vmem [resolvable:$true] %s24
      %30 = dma.hbm_to_vmem [thread:$0]  %s2, 8192, %s25, [#allocation4], 512, 512, 32
    $region13: #{tpu_custom_call.1} parent=1 // pred_fallthru
      _
    // Predicated region
    $region14: #{tpu_custom_call.1} parent=1 // pred_check
      _
    $region15: #{tpu_custom_call.1} parent=1 // pred_check_branch
      %32 = sbr.rel (0) target = $region17
    $region16: #{tpu_custom_call.1} parent=1 // pred_region
      _
    $region17: #{tpu_custom_call.1} parent=1 // pred_fallthru
      _
    // Predicated region
    $region18: #{tpu_custom_call.1} parent=1 // pred_check
      _
    $region19: #{tpu_custom_call.1} parent=1 // pred_check_branch
      %34 = sbr.rel (0) target = $region21
    $region20: #{tpu_custom_call.1} parent=1 // pred_region
      _
    $region21: #{tpu_custom_call.1} parent=1 // pred_fallthru
      _
    // Predicated region
    $region22: #{tpu_custom_call.1} parent=1 // pred_check
      _
    $region23: #{tpu_custom_call.1} parent=1 // pred_check_branch
      %36 = sbr.rel (0) target = $region25
    $region24: #{tpu_custom_call.1} parent=1 // pred_region
      _
    $region25: #{tpu_custom_call.1} parent=1 // pred_fallthru
      _
    // Predicated region
    $region26: #{tpu_custom_call.1} parent=1 // pred_check
      _
    $region27: #{tpu_custom_call.1} parent=1 // pred_check_branch
      %38 = sbr.rel (0) target = $region29
    $region28: #{tpu_custom_call.1} parent=1 // pred_region
      _
    $region29: #{tpu_custom_call.1} parent=1 // pred_fallthru
      _
    // Predicated region
    $region30: #{tpu_custom_call.1} parent=1 // pred_check
      _
    $region31: #{tpu_custom_call.1} parent=1 // pred_check_branch
      %40 = sbr.rel (0) target = $region33
    $region32: #{tpu_custom_call.1} parent=1 // pred_region
      _
    $region33: #{tpu_custom_call.1} parent=1 // pred_fallthru
      _
    // Predicated region
    $region34: #{tpu_custom_call.1} parent=1 // pred_check
      _
    $region35: #{tpu_custom_call.1} parent=1 // pred_check_branch
      %42 = sbr.rel (0) target = $region37
    $region36: #{tpu_custom_call.1} parent=1 // pred_region
      %43 = dma.done [#allocation4], 8192
    $region37: #{tpu_custom_call.1} parent=1 // pred_fallthru
      _
    %v44 = vld [vmem:[%s0] sm:$0xff]
    %v45 = vld [vmem:[%s0 + $0x8] sm:$0xff]
    %v46 = vld [vmem:[%s1] sm:$0xff]
    %v47 = vld [vmem:[%s1 + $0x8] sm:$0xff]
    %v48 = vld [vmem:[%s1 + $0x10] sm:$0xff]
    %v49 = vld [vmem:[%s1 + $0x18] sm:$0xff]
    %v50 = vld [vmem:[%s1 + $0x20] sm:$0x1]
    %v51 = vld [vmem:[%s1 + $0x28] sm:$0x1]
    %v52 = vld [vmem:[%s1 + $0x30] sm:$0x1]
    %v53 = vld [vmem:[%s1 + $0x38] sm:$0x1]
    %v54 = vld [vmem:[%s3] sm:$0xf]
    %v56 = vlaneseq
    %v57 = vshrl.u32 %v56, 7
    %v58 = vsub.s32 0, %v57
    %v59 = vrot.slane %v54, %v58
    %v60 = vlaneseq
    %v61 = vshrl.u32 %v60, 7
    %v62 = vsub.s32 1, %v61
    %v63 = vrot.slane %v54, %v62
    %v64 = vlaneseq
    %v65 = vshrl.u32 %v64, 7
    %v66 = vsub.s32 2, %v65
    %v67 = vrot.slane %v54, %v66
    %v68 = vlaneseq
    %v69 = vshrl.u32 %v68, 7
    %v70 = vsub.s32 3, %v69
    %v71 = vrot.slane %v54, %v70
    %vm76 = vcmask 72704
    %v78 = vsel %vm76, %v44, 0
    %v81 = vsel %vm76, %v45, 0
    %vm83 = vcmask 1040384
    %v85 = vsel %vm83, %v50, 0
    %v88 = vsel %vm83, %v51, 0
    %v91 = vsel %vm83, %v52, 0
    %v94 = vsel %vm83, %v53, 0
    %96 = vmatprep.subr.mxu0 0.0
    %97 = vmatpush1.msra.mxu0 0.0
    %98 = vmatprep.subr.mxu0 0.0
    %99 = vmatpush1.msra.mxu0 0.0
    %100 = vmatprep.subr.mxu0 0.0
    %101 = vmatpush1.msra.mxu0 0.0
    %102 = vmatprep.subr.mxu0 0.0
    %103 = vmatpush1.msra.mxu0 0.0
    %104 = vmatprep.subr.mxu0 0.0
    %105 = vmatpush1.msra.mxu0 0.0
    %106 = vmatprep.subr.mxu0 0.0
    %107 = vmatpush1.msra.mxu0 0.0
    %108 = vmatprep.subr.mxu0 0.0
    %109 = vmatpush1.msra.mxu0 0.0
    %110 = vmatprep.subr.mxu0 0.0
    %111 = vmatpush1.msra.mxu0 0.0
    %112 = vmatprep.subr.mxu0 0.0
    %113 = vmatpush1.msra.mxu0 0.0
    %114 = vmatprep.subr.mxu0 0.0
    %115 = vmatpush1.msra.mxu0 0.0
    %116 = vmatprep.subr.mxu0 0.0
    %117 = vmatpush1.msra.mxu0 0.0
    %118 = vmatprep.subr.mxu0 0.0
    %119 = vmatpush1.msra.mxu0 0.0
    %120 = vmatprep.subr.mxu0 0.0
    %121 = vmatpush1.msra.mxu0 0.0
    %122 = vmatprep.subr.mxu0 0.0
    %123 = vmatpush1.msra.mxu0 0.0
    %124 = vmatprep.subr.mxu0 %v88
    %125 = vmatpush1.msra.mxu0 %v85
    %126 = vmatprep.subr.mxu0 %v47
    %127 = vmatpush1.msra.mxu0 %v46
    %128 = vmatprep.subr.mxu0 0.0
    %129 = vmatpush2.msra.mxu0 0.0
    %130 = vmatprep.subr.mxu0 0.0
    %131 = vmatpush2.msra.mxu0 0.0
    %132 = vmatprep.subr.mxu0 0.0
    %133 = vmatpush2.msra.mxu0 0.0
    %134 = vmatprep.subr.mxu0 0.0
    %135 = vmatpush2.msra.mxu0 0.0
    %136 = vmatprep.subr.mxu0 0.0
    %137 = vmatpush2.msra.mxu0 0.0
    %138 = vmatprep.subr.mxu0 0.0
    %139 = vmatpush2.msra.mxu0 0.0
    %140 = vmatprep.subr.mxu0 0.0
    %141 = vmatpush2.msra.mxu0 0.0
    %142 = vmatprep.subr.mxu0 0.0
    %143 = vmatpush2.msra.mxu0 0.0
    %144 = vmatprep.subr.mxu0 0.0
    %145 = vmatpush2.msra.mxu0 0.0
    %146 = vmatprep.subr.mxu0 0.0
    %147 = vmatpush2.msra.mxu0 0.0
    %148 = vmatprep.subr.mxu0 0.0
    %149 = vmatpush2.msra.mxu0 0.0
    %150 = vmatprep.subr.mxu0 0.0
    %151 = vmatpush2.msra.mxu0 0.0
    %152 = vmatprep.subr.mxu0 0.0
    %153 = vmatpush2.msra.mxu0 0.0
    %154 = vmatprep.subr.mxu0 0.0
    %155 = vmatpush2.msra.mxu0 0.0
    %156 = vmatprep.subr.mxu0 0.0
    %157 = vmatpush2.msra.mxu0 0.0
    %158 = vmatprep.subr.mxu0 0.0
    %159 = vmatpush2.msra.mxu0 0.0
    %160 = vmatprep.mubr.f32.mxu0 0.0
    %161 = vmatmul.mubr.f32.gmra.mxu0 %v78
    %v162 = vpop.f32.mrf.mxu0
    %v163 = vadd.f32 %v59, %v162
    %v164 = vpop.f32.mrf.mxu0
    %v165 = vadd.f32 %v63, %v164
    %166 = vmatprep.mubr.f32.mxu0 0.0
    %167 = vmatmul.mubr.f32.gmra.mxu0 %v81
    %v168 = vpop.f32.mrf.mxu0
    %v169 = vadd.f32 %v59, %v168
    %v170 = vpop.f32.mrf.mxu0
    %v171 = vadd.f32 %v63, %v170
    %172 = vdwg.mxu0
    %173 = vmatprep.subr.mxu0 0.0
    %174 = vmatpush1.msra.mxu0 0.0
    %175 = vmatprep.subr.mxu0 0.0
    %176 = vmatpush1.msra.mxu0 0.0
    %177 = vmatprep.subr.mxu0 0.0
    %178 = vmatpush1.msra.mxu0 0.0
    %179 = vmatprep.subr.mxu0 0.0
    %180 = vmatpush1.msra.mxu0 0.0
    %181 = vmatprep.subr.mxu0 0.0
    %182 = vmatpush1.msra.mxu0 0.0
    %183 = vmatprep.subr.mxu0 0.0
    %184 = vmatpush1.msra.mxu0 0.0
    %185 = vmatprep.subr.mxu0 0.0
    %186 = vmatpush1.msra.mxu0 0.0
    %187 = vmatprep.subr.mxu0 0.0
    %188 = vmatpush1.msra.mxu0 0.0
    %189 = vmatprep.subr.mxu0 0.0
    %190 = vmatpush1.msra.mxu0 0.0
    %191 = vmatprep.subr.mxu0 0.0
    %192 = vmatpush1.msra.mxu0 0.0
    %193 = vmatprep.subr.mxu0 0.0
    %194 = vmatpush1.msra.mxu0 0.0
    %195 = vmatprep.subr.mxu0 0.0
    %196 = vmatpush1.msra.mxu0 0.0
    %197 = vmatprep.subr.mxu0 0.0
    %198 = vmatpush1.msra.mxu0 0.0
    %199 = vmatprep.subr.mxu0 0.0
    %200 = vmatpush1.msra.mxu0 0.0
    %201 = vmatprep.subr.mxu0 %v94
    %202 = vmatpush1.msra.mxu0 %v91
    %203 = vmatprep.subr.mxu0 %v49
    %204 = vmatpush1.msra.mxu0 %v48
    %205 = vmatprep.subr.mxu0 0.0
    %206 = vmatpush2.msra.mxu0 0.0
    %207 = vmatprep.subr.mxu0 0.0
    %208 = vmatpush2.msra.mxu0 0.0
    %209 = vmatprep.subr.mxu0 0.0
    %210 = vmatpush2.msra.mxu0 0.0
    %211 = vmatprep.subr.mxu0 0.0
    %212 = vmatpush2.msra.mxu0 0.0
    %213 = vmatprep.subr.mxu0 0.0
    %214 = vmatpush2.msra.mxu0 0.0
    %215 = vmatprep.subr.mxu0 0.0
    %216 = vmatpush2.msra.mxu0 0.0
    %217 = vmatprep.subr.mxu0 0.0
    %218 = vmatpush2.msra.mxu0 0.0
    %219 = vmatprep.subr.mxu0 0.0
    %220 = vmatpush2.msra.mxu0 0.0
    %221 = vmatprep.subr.mxu0 0.0
    %222 = vmatpush2.msra.mxu0 0.0
    %223 = vmatprep.subr.mxu0 0.0
    %224 = vmatpush2.msra.mxu0 0.0
    %225 = vmatprep.subr.mxu0 0.0
    %226 = vmatpush2.msra.mxu0 0.0
    %227 = vmatprep.subr.mxu0 0.0
    %228 = vmatpush2.msra.mxu0 0.0
    %229 = vmatprep.subr.mxu0 0.0
    %230 = vmatpush2.msra.mxu0 0.0
    %231 = vmatprep.subr.mxu0 0.0
    %232 = vmatpush2.msra.mxu0 0.0
    %233 = vmatprep.subr.mxu0 0.0
    %234 = vmatpush2.msra.mxu0 0.0
    %235 = vmatprep.subr.mxu0 0.0
    %236 = vmatpush2.msra.mxu0 0.0
    %237 = vmatprep.mubr.f32.mxu0 0.0
    %238 = vmatmul.mubr.f32.gmra.mxu0 %v78
    %v239 = vpop.f32.mrf.mxu0
    %v240 = vadd.f32 %v67, %v239
    %v241 = vpop.f32.mrf.mxu0
    %v242 = vadd.f32 %v71, %v241
    %243 = vmatprep.mubr.f32.mxu0 0.0
    %244 = vmatmul.mubr.f32.gmra.mxu0 %v81
    %v245 = vpop.f32.mrf.mxu0
    %v246 = vadd.f32 %v67, %v245
    %v247 = vpop.f32.mrf.mxu0
    %v248 = vadd.f32 %v71, %v247
    %249 = vdwg.mxu0
    %250 = vst [vmem:[#allocation2] sm:$0xff] %v163
    %251 = vst [vmem:[#allocation2 + $0x8] sm:$0xff] %v165
    %252 = vst [vmem:[#allocation2 + $0x10] sm:$0xff] %v240
    %253 = vst [vmem:[#allocation2 + $0x18] sm:$0xff] %v242
    %254 = vst [vmem:[#allocation2 + $0x20] sm:$0xff] %v169
    %255 = vst [vmem:[#allocation2 + $0x28] sm:$0xff] %v171
    %256 = vst [vmem:[#allocation2 + $0x30] sm:$0xff] %v246
    %257 = vst [vmem:[#allocation2 + $0x38] sm:$0xff] %v248
    %v258 = vld [vmem:[#allocation3] sm:$0xff]
    %v259 = vld [vmem:[#allocation3 + $0x8] sm:$0xff]
    %v260 = vld [vmem:[#allocation3 + $0x10] sm:$0xff]
    %v261 = vld [vmem:[#allocation3 + $0x18] sm:$0xff]
    %v262 = vld [vmem:[#allocation3 + $0x20] sm:$0xff]
    %v263 = vld [vmem:[#allocation3 + $0x28] sm:$0xff]
    %v264 = vld [vmem:[#allocation3 + $0x30] sm:$0xff]
    %v265 = vld [vmem:[#allocation3 + $0x38] sm:$0xff]
    %v266 = vld [vmem:[#allocation3 + $0x40] sm:$0xff]
    %v267 = vld [vmem:[#allocation3 + $0x48] sm:$0xff]
    %v268 = vld [vmem:[#allocation3 + $0x50] sm:$0xff]
    %v269 = vld [vmem:[#allocation3 + $0x58] sm:$0xff]
    %v270 = vld [vmem:[#allocation3 + $0x60] sm:$0xff]
    %v271 = vld [vmem:[#allocation3 + $0x68] sm:$0xff]
    %v272 = vld [vmem:[#allocation3 + $0x70] sm:$0xff]
    %v273 = vld [vmem:[#allocation3 + $0x78] sm:$0xff]
    %v274 = vld [vmem:[#allocation3 + $0x80] sm:$0xff]
    %v275 = vld [vmem:[#allocation3 + $0x88] sm:$0xff]
    %v276 = vld [vmem:[#allocation3 + $0x90] sm:$0xff]
    %v277 = vld [vmem:[#allocation3 + $0x98] sm:$0xff]
    %v278 = vld [vmem:[#allocation3 + $0xa0] sm:$0xff]
    %v279 = vld [vmem:[#allocation3 + $0xa8] sm:$0xff]
    %v280 = vld [vmem:[#allocation3 + $0xb0] sm:$0xff]
    %v281 = vld [vmem:[#allocation3 + $0xb8] sm:$0xff]
    %v282 = vld [vmem:[#allocation3 + $0xc0] sm:$0xff]
    %v283 = vld [vmem:[#allocation3 + $0xc8] sm:$0xff]
    %v284 = vld [vmem:[#allocation3 + $0xd0] sm:$0xff]
    %v285 = vld [vmem:[#allocation3 + $0xd8] sm:$0xff]
    %v286 = vld [vmem:[#allocation3 + $0xe0] sm:$0xff]
    %v287 = vld [vmem:[#allocation3 + $0xe8] sm:$0xff]
    %v288 = vld [vmem:[#allocation3 + $0xf0] sm:$0xff]
    %v289 = vld [vmem:[#allocation3 + $0xf8] sm:$0xff]
    %v290 = vld [vmem:[#allocation3 + $0x100] sm:$0xff]
    %v291 = vld [vmem:[#allocation3 + $0x108] sm:$0xff]
    %v292 = vld [vmem:[#allocation3 + $0x110] sm:$0xff]
    %v293 = vld [vmem:[#allocation3 + $0x118] sm:$0xff]
    %v294 = vld [vmem:[#allocation3 + $0x120] sm:$0xff]
    %v295 = vld [vmem:[#allocation3 + $0x128] sm:$0xff]
    %v296 = vld [vmem:[#allocation3 + $0x130] sm:$0xff]
    %v297 = vld [vmem:[#allocation3 + $0x138] sm:$0xff]
    %v298 = vld [vmem:[#allocation3 + $0x140] sm:$0xff]
    %v299 = vld [vmem:[#allocation3 + $0x148] sm:$0xff]
    %v300 = vld [vmem:[#allocation3 + $0x150] sm:$0xff]
    %v301 = vld [vmem:[#allocation3 + $0x158] sm:$0xff]
    %v302 = vld [vmem:[#allocation3 + $0x160] sm:$0xff]
    %v303 = vld [vmem:[#allocation3 + $0x168] sm:$0xff]
    %v304 = vld [vmem:[#allocation3 + $0x170] sm:$0xff]
    %v305 = vld [vmem:[#allocation3 + $0x178] sm:$0xff]
    %v306 = vld [vmem:[#allocation3 + $0x180] sm:$0xff]
    %v307 = vld [vmem:[#allocation3 + $0x188] sm:$0xff]
    %v308 = vld [vmem:[#allocation3 + $0x190] sm:$0xff]
    %v309 = vld [vmem:[#allocation3 + $0x198] sm:$0xff]
    %v310 = vld [vmem:[#allocation3 + $0x1a0] sm:$0xff]
    %v311 = vld [vmem:[#allocation3 + $0x1a8] sm:$0xff]
    %v312 = vld [vmem:[#allocation3 + $0x1b0] sm:$0xff]
    %v313 = vld [vmem:[#allocation3 + $0x1b8] sm:$0xff]
    %v314 = vld [vmem:[#allocation3 + $0x1c0] sm:$0xff]
    %v315 = vld [vmem:[#allocation3 + $0x1c8] sm:$0xff]
    %v316 = vld [vmem:[#allocation3 + $0x1d0] sm:$0xff]
    %v317 = vld [vmem:[#allocation3 + $0x1d8] sm:$0xff]
    %v318 = vld [vmem:[#allocation3 + $0x1e0] sm:$0xff]
    %v319 = vld [vmem:[#allocation3 + $0x1e8] sm:$0xff]
    %v320 = vld [vmem:[#allocation3 + $0x1f0] sm:$0xff]
    %v321 = vld [vmem:[#allocation3 + $0x1f8] sm:$0xff]
    %v322 = vld [vmem:[#allocation2] sm:$0x3]
    %v323 = vld [vmem:[#allocation2 + $0x8] sm:$0x3]
    %v324 = vld [vmem:[#allocation2 + $0x10] sm:$0x3]
    %v325 = vld [vmem:[#allocation2 + $0x18] sm:$0x3]
    %326 = vmatprep.subr.mxu0 %v319
    %327 = vmatpush1.msra.mxu0 %v318
    %328 = vmatprep.subr.mxu0 %v315
    %329 = vmatpush1.msra.mxu0 %v314
    %330 = vmatprep.subr.mxu0 %v311
    %331 = vmatpush1.msra.mxu0 %v310
    %332 = vmatprep.subr.mxu0 %v307
    %333 = vmatpush1.msra.mxu0 %v306
    %334 = vmatprep.subr.mxu0 %v303
    %335 = vmatpush1.msra.mxu0 %v302
    %336 = vmatprep.subr.mxu0 %v299
    %337 = vmatpush1.msra.mxu0 %v298
    %338 = vmatprep.subr.mxu0 %v295
    %339 = vmatpush1.msra.mxu0 %v294
    %340 = vmatprep.subr.mxu0 %v291
    %341 = vmatpush1.msra.mxu0 %v290
    %342 = vmatprep.subr.mxu0 %v287
    %343 = vmatpush1.msra.mxu0 %v286
    %344 = vmatprep.subr.mxu0 %v283
    %345 = vmatpush1.msra.mxu0 %v282
    %346 = vmatprep.subr.mxu0 %v279
    %347 = vmatpush1.msra.mxu0 %v278
    %348 = vmatprep.subr.mxu0 %v275
    %349 = vmatpush1.msra.mxu0 %v274
    %350 = vmatprep.subr.mxu0 %v271
    %351 = vmatpush1.msra.mxu0 %v270
    %352 = vmatprep.subr.mxu0 %v267
    %353 = vmatpush1.msra.mxu0 %v266
    %354 = vmatprep.subr.mxu0 %v263
    %355 = vmatpush1.msra.mxu0 %v262
    %356 = vmatprep.subr.mxu0 %v259
    %357 = vmatpush1.msra.mxu0 %v258
    %358 = vmatprep.subr.mxu0 0.0
    %359 = vmatpush2.msra.mxu0 0.0
    %360 = vmatprep.subr.mxu0 0.0
    %361 = vmatpush2.msra.mxu0 0.0
    %362 = vmatprep.subr.mxu0 0.0
    %363 = vmatpush2.msra.mxu0 0.0
    %364 = vmatprep.subr.mxu0 0.0
    %365 = vmatpush2.msra.mxu0 0.0
    %366 = vmatprep.subr.mxu0 0.0
    %367 = vmatpush2.msra.mxu0 0.0
    %368 = vmatprep.subr.mxu0 0.0
    %369 = vmatpush2.msra.mxu0 0.0
    %370 = vmatprep.subr.mxu0 0.0
    %371 = vmatpush2.msra.mxu0 0.0
    %372 = vmatprep.subr.mxu0 0.0
    %373 = vmatpush2.msra.mxu0 0.0
    %374 = vmatprep.subr.mxu0 0.0
    %375 = vmatpush2.msra.mxu0 0.0
    %376 = vmatprep.subr.mxu0 0.0
    %377 = vmatpush2.msra.mxu0 0.0
    %378 = vmatprep.subr.mxu0 0.0
    %379 = vmatpush2.msra.mxu0 0.0
    %380 = vmatprep.subr.mxu0 0.0
    %381 = vmatpush2.msra.mxu0 0.0
    %382 = vmatprep.subr.mxu0 0.0
    %383 = vmatpush2.msra.mxu0 0.0
    %384 = vmatprep.subr.mxu0 0.0
    %385 = vmatpush2.msra.mxu0 0.0
    %386 = vmatprep.subr.mxu0 0.0
    %387 = vmatpush2.msra.mxu0 0.0
    %388 = vmatprep.subr.mxu0 0.0
    %389 = vmatpush2.msra.mxu0 0.0
    %390 = vmatprep.mubr.f32.mxu0 0.0
    %391 = vmatmul.mubr.f32.gmra.mxu0 0.0
    %v392 = vpop.f32.mrf.mxu0
    %v393 = vadd.f32 0.0, %v392
    %v394 = vpop.f32.mrf.mxu0
    %v395 = vadd.f32 0.0, %v394
    %396 = vdwg.mxu0
    %397 = vmatprep.subr.mxu0 %v321
    %398 = vmatpush1.msra.mxu0 %v320
    %399 = vmatprep.subr.mxu0 %v317
    %400 = vmatpush1.msra.mxu0 %v316
    %401 = vmatprep.subr.mxu0 %v313
    %402 = vmatpush1.msra.mxu0 %v312
    %403 = vmatprep.subr.mxu0 %v309
    %404 = vmatpush1.msra.mxu0 %v308
    %405 = vmatprep.subr.mxu0 %v305
    %406 = vmatpush1.msra.mxu0 %v304
    %407 = vmatprep.subr.mxu0 %v301
    %408 = vmatpush1.msra.mxu0 %v300
    %409 = vmatprep.subr.mxu0 %v297
    %410 = vmatpush1.msra.mxu0 %v296
    %411 = vmatprep.subr.mxu0 %v293
    %412 = vmatpush1.msra.mxu0 %v292
    %413 = vmatprep.subr.mxu0 %v289
    %414 = vmatpush1.msra.mxu0 %v288
    %415 = vmatprep.subr.mxu0 %v285
    %416 = vmatpush1.msra.mxu0 %v284
    %417 = vmatprep.subr.mxu0 %v281
    %418 = vmatpush1.msra.mxu0 %v280
    %419 = vmatprep.subr.mxu0 %v277
    %420 = vmatpush1.msra.mxu0 %v276
    %421 = vmatprep.subr.mxu0 %v273
    %422 = vmatpush1.msra.mxu0 %v272
    %423 = vmatprep.subr.mxu0 %v269
    %424 = vmatpush1.msra.mxu0 %v268
    %425 = vmatprep.subr.mxu0 %v265
    %426 = vmatpush1.msra.mxu0 %v264
    %427 = vmatprep.subr.mxu0 %v261
    %428 = vmatpush1.msra.mxu0 %v260
    %429 = vmatprep.subr.mxu0 0.0
    %430 = vmatpush2.msra.mxu0 0.0
    %431 = vmatprep.subr.mxu0 0.0
    %432 = vmatpush2.msra.mxu0 0.0
    %433 = vmatprep.subr.mxu0 0.0
    %434 = vmatpush2.msra.mxu0 0.0
    %435 = vmatprep.subr.mxu0 0.0
    %436 = vmatpush2.msra.mxu0 0.0
    %437 = vmatprep.subr.mxu0 0.0
    %438 = vmatpush2.msra.mxu0 0.0
    %439 = vmatprep.subr.mxu0 0.0
    %440 = vmatpush2.msra.mxu0 0.0
    %441 = vmatprep.subr.mxu0 0.0
    %442 = vmatpush2.msra.mxu0 0.0
    %443 = vmatprep.subr.mxu0 0.0
    %444 = vmatpush2.msra.mxu0 0.0
    %445 = vmatprep.subr.mxu0 0.0
    %446 = vmatpush2.msra.mxu0 0.0
    %447 = vmatprep.subr.mxu0 0.0
    %448 = vmatpush2.msra.mxu0 0.0
    %449 = vmatprep.subr.mxu0 0.0
    %450 = vmatpush2.msra.mxu0 0.0
    %451 = vmatprep.subr.mxu0 0.0
    %452 = vmatpush2.msra.mxu0 0.0
    %453 = vmatprep.subr.mxu0 0.0
    %454 = vmatpush2.msra.mxu0 0.0
    %455 = vmatprep.subr.mxu0 0.0
    %456 = vmatpush2.msra.mxu0 0.0
    %457 = vmatprep.subr.mxu0 0.0
    %458 = vmatpush2.msra.mxu0 0.0
    %459 = vmatprep.subr.mxu0 0.0
    %460 = vmatpush2.msra.mxu0 0.0
    %461 = vmatprep.mubr.f32.mxu0 0.0
    %462 = vmatmul.mubr.f32.gmra.mxu0 0.0
    %v463 = vpop.f32.mrf.mxu0
    %v464 = vadd.f32 0.0, %v463
    %v465 = vpop.f32.mrf.mxu0
    %v466 = vadd.f32 0.0, %v465
    %467 = vdwg.mxu0
    %v468 = vadd.f32 %v322, %v393
    %v469 = vadd.f32 %v323, %v395
    %v470 = vadd.f32 %v324, %v464
    %v471 = vadd.f32 %v325, %v466
    %v472 = vxor.u32 %v468, 2147483648
    %v473 = vmul.f32 %v472, 1.442695
    %v474 = vpow.pop %v473
    %v475 = vadd.f32 %v474, 1.0
    %v476 = vrcp.pop %v475
    %v477 = vmul.f32 1.0, %v476
    %v478 = vxor.u32 %v469, 2147483648
    %v479 = vmul.f32 %v478, 1.442695
    %v480 = vpow.pop %v479
    %v481 = vadd.f32 %v480, 1.0
    %v482 = vrcp.pop %v481
    %v483 = vmul.f32 1.0, %v482
    %v484 = vtanh.pop %v470
    %v485 = vxor.u32 %v471, 2147483648
    %v486 = vmul.f32 %v485, 1.442695
    %v487 = vpow.pop %v486
    %v488 = vadd.f32 %v487, 1.0
    %v489 = vrcp.pop %v488
    %v490 = vmul.f32 1.0, %v489
    %v491 = vmul.f32 %v483, 0.0
    %v492 = vmul.f32 %v477, %v484
    %v493 = vadd.f32 %v491, %v492
    %v494 = vtanh.pop %v493
    %v495 = vmul.f32 %v490, %v494
    %v496 = vld [vmem:[#allocation2] sm:$0xc]
    %v497 = vld [vmem:[#allocation2 + $0x8] sm:$0xc]
    %v498 = vld [vmem:[#allocation2 + $0x10] sm:$0xc]
    %v499 = vld [vmem:[#allocation2 + $0x18] sm:$0xc]
    %500 = vmatprep.subr.mxu0 %v319
    %501 = vmatpush1.msra.mxu0 %v318
    %502 = vmatprep.subr.mxu0 %v315
    %503 = vmatpush1.msra.mxu0 %v314
    %504 = vmatprep.subr.mxu0 %v311
    %505 = vmatpush1.msra.mxu0 %v310
    %506 = vmatprep.subr.mxu0 %v307
    %507 = vmatpush1.msra.mxu0 %v306
    %508 = vmatprep.subr.mxu0 %v303
    %509 = vmatpush1.msra.mxu0 %v302
    %510 = vmatprep.subr.mxu0 %v299
    %511 = vmatpush1.msra.mxu0 %v298
    %512 = vmatprep.subr.mxu0 %v295
    %513 = vmatpush1.msra.mxu0 %v294
    %514 = vmatprep.subr.mxu0 %v291
    %515 = vmatpush1.msra.mxu0 %v290
    %516 = vmatprep.subr.mxu0 %v287
    %517 = vmatpush1.msra.mxu0 %v286
    %518 = vmatprep.subr.mxu0 %v283
    %519 = vmatpush1.msra.mxu0 %v282
    %520 = vmatprep.subr.mxu0 %v279
    %521 = vmatpush1.msra.mxu0 %v278
    %522 = vmatprep.subr.mxu0 %v275
    %523 = vmatpush1.msra.mxu0 %v274
    %524 = vmatprep.subr.mxu0 %v271
    %525 = vmatpush1.msra.mxu0 %v270
    %526 = vmatprep.subr.mxu0 %v267
    %527 = vmatpush1.msra.mxu0 %v266
    %528 = vmatprep.subr.mxu0 %v263
    %529 = vmatpush1.msra.mxu0 %v262
    %530 = vmatprep.subr.mxu0 %v259
    %531 = vmatpush1.msra.mxu0 %v258
    %532 = vmatprep.subr.mxu0 0.0
    %533 = vmatpush2.msra.mxu0 0.0
    %534 = vmatprep.subr.mxu0 0.0
    %535 = vmatpush2.msra.mxu0 0.0
    %536 = vmatprep.subr.mxu0 0.0
    %537 = vmatpush2.msra.mxu0 0.0
    %538 = vmatprep.subr.mxu0 0.0
    %539 = vmatpush2.msra.mxu0 0.0
    %540 = vmatprep.subr.mxu0 0.0
    %541 = vmatpush2.msra.mxu0 0.0
    %542 = vmatprep.subr.mxu0 0.0
    %543 = vmatpush2.msra.mxu0 0.0
    %544 = vmatprep.subr.mxu0 0.0
    %545 = vmatpush2.msra.mxu0 0.0
    %546 = vmatprep.subr.mxu0 0.0
    %547 = vmatpush2.msra.mxu0 0.0
    %548 = vmatprep.subr.mxu0 0.0
    %549 = vmatpush2.msra.mxu0 0.0
    %550 = vmatprep.subr.mxu0 0.0
    %551 = vmatpush2.msra.mxu0 0.0
    %552 = vmatprep.subr.mxu0 0.0
    %553 = vmatpush2.msra.mxu0 0.0
    %554 = vmatprep.subr.mxu0 0.0
    %555 = vmatpush2.msra.mxu0 0.0
    %556 = vmatprep.subr.mxu0 0.0
    %557 = vmatpush2.msra.mxu0 0.0
    %558 = vmatprep.subr.mxu0 0.0
    %559 = vmatpush2.msra.mxu0 0.0
    %560 = vmatprep.subr.mxu0 0.0
    %561 = vmatpush2.msra.mxu0 0.0
    %562 = vmatprep.subr.mxu0 0.0
    %563 = vmatpush2.msra.mxu0 0.0
    %564 = vmatprep.mubr.f32.mxu0 0.0
    %565 = vmatmul.mubr.f32.gmra.mxu0 %v495
    %v566 = vpop.f32.mrf.mxu0
    %v567 = vadd.f32 0.0, %v566
    %v568 = vpop.f32.mrf.mxu0
    %v569 = vadd.f32 0.0, %v568
    %570 = vdwg.mxu0
    %571 = vmatprep.subr.mxu0 %v321
    %572 = vmatpush1.msra.mxu0 %v320
    %573 = vmatprep.subr.mxu0 %v317
    %574 = vmatpush1.msra.mxu0 %v316
    %575 = vmatprep.subr.mxu0 %v313
    %576 = vmatpush1.msra.mxu0 %v312
    %577 = vmatprep.subr.mxu0 %v309
    %578 = vmatpush1.msra.mxu0 %v308
    %579 = vmatprep.subr.mxu0 %v305
    %580 = vmatpush1.msra.mxu0 %v304
    %581 = vmatprep.subr.mxu0 %v301
    %582 = vmatpush1.msra.mxu0 %v300
    %583 = vmatprep.subr.mxu0 %v297
    %584 = vmatpush1.msra.mxu0 %v296
    %585 = vmatprep.subr.mxu0 %v293
    %586 = vmatpush1.msra.mxu0 %v292
    %587 = vmatprep.subr.mxu0 %v289
    %588 = vmatpush1.msra.mxu0 %v288
    %589 = vmatprep.subr.mxu0 %v285
    %590 = vmatpush1.msra.mxu0 %v284
    %591 = vmatprep.subr.mxu0 %v281
    %592 = vmatpush1.msra.mxu0 %v280
    %593 = vmatprep.subr.mxu0 %v277
    %594 = vmatpush1.msra.mxu0 %v276
    %595 = vmatprep.subr.mxu0 %v273
    %596 = vmatpush1.msra.mxu0 %v272
    %597 = vmatprep.subr.mxu0 %v269
    %598 = vmatpush1.msra.mxu0 %v268
    %599 = vmatprep.subr.mxu0 %v265
    %600 = vmatpush1.msra.mxu0 %v264
    %601 = vmatprep.subr.mxu0 %v261
    %602 = vmatpush1.msra.mxu0 %v260
    %603 = vmatprep.subr.mxu0 0.0
    %604 = vmatpush2.msra.mxu0 0.0
    %605 = vmatprep.subr.mxu0 0.0
    %606 = vmatpush2.msra.mxu0 0.0
    %607 = vmatprep.subr.mxu0 0.0
    %608 = vmatpush2.msra.mxu0 0.0
    %609 = vmatprep.subr.mxu0 0.0
    %610 = vmatpush2.msra.mxu0 0.0
    %611 = vmatprep.subr.mxu0 0.0
    %612 = vmatpush2.msra.mxu0 0.0
    %613 = vmatprep.subr.mxu0 0.0
    %614 = vmatpush2.msra.mxu0 0.0
    %615 = vmatprep.subr.mxu0 0.0
    %616 = vmatpush2.msra.mxu0 0.0
    %617 = vmatprep.subr.mxu0 0.0
    %618 = vmatpush2.msra.mxu0 0.0
    %619 = vmatprep.subr.mxu0 0.0
    %620 = vmatpush2.msra.mxu0 0.0
    %621 = vmatprep.subr.mxu0 0.0
    %622 = vmatpush2.msra.mxu0 0.0
    %623 = vmatprep.subr.mxu0 0.0
    %624 = vmatpush2.msra.mxu0 0.0
    %625 = vmatprep.subr.mxu0 0.0
    %626 = vmatpush2.msra.mxu0 0.0
    %627 = vmatprep.subr.mxu0 0.0
    %628 = vmatpush2.msra.mxu0 0.0
    %629 = vmatprep.subr.mxu0 0.0
    %630 = vmatpush2.msra.mxu0 0.0
    %631 = vmatprep.subr.mxu0 0.0
    %632 = vmatpush2.msra.mxu0 0.0
    %633 = vmatprep.subr.mxu0 0.0
    %634 = vmatpush2.msra.mxu0 0.0
    %635 = vmatprep.mubr.f32.mxu0 0.0
    %636 = vmatmul.mubr.f32.gmra.mxu0 %v495
    %v637 = vpop.f32.mrf.mxu0
    %v638 = vadd.f32 0.0, %v637
    %v639 = vpop.f32.mrf.mxu0
    %v640 = vadd.f32 0.0, %v639
    %641 = vdwg.mxu0
    %v646 = vrot.slane %v567, 6
    %v647 = vrot.slane %v569, 6
    %v648 = vrot.slane %v638, 6
    %v649 = vrot.slane %v640, 6
    %v654 = vadd.f32 %v496, %v646
    %v655 = vadd.f32 %v497, %v647
    %v656 = vadd.f32 %v498, %v648
    %v657 = vadd.f32 %v499, %v649
    %v658 = vxor.u32 %v654, 2147483648
    %v659 = vmul.f32 %v658, 1.442695
    %v660 = vpow.pop %v659
    %v661 = vadd.f32 %v660, 1.0
    %v662 = vrcp.pop %v661
    %v663 = vmul.f32 1.0, %v662
    %v664 = vxor.u32 %v655, 2147483648
    %v665 = vmul.f32 %v664, 1.442695
    %v666 = vpow.pop %v665
    %v667 = vadd.f32 %v666, 1.0
    %v668 = vrcp.pop %v667
    %v669 = vmul.f32 1.0, %v668
    %v670 = vtanh.pop %v656
    %v671 = vxor.u32 %v657, 2147483648
    %v672 = vmul.f32 %v671, 1.442695
    %v673 = vpow.pop %v672
    %v674 = vadd.f32 %v673, 1.0
    %v675 = vrcp.pop %v674
    %v676 = vmul.f32 1.0, %v675
    %v678 = vrot.slane %v493, 6
    %v680 = vmul.f32 %v669, %v678
    %v681 = vmul.f32 %v663, %v670
    %v682 = vadd.f32 %v680, %v681
    %v683 = vtanh.pop %v682
    %v684 = vmul.f32 %v676, %v683
    %v685 = vld [vmem:[#allocation2] sm:$0x30]
    %v686 = vld [vmem:[#allocation2 + $0x8] sm:$0x30]
    %v687 = vld [vmem:[#allocation2 + $0x10] sm:$0x30]
    %v688 = vld [vmem:[#allocation2 + $0x18] sm:$0x30]
    %v690 = vrot.slane %v684, 2
    %692 = vmatprep.subr.mxu0 %v319
    %693 = vmatpush1.msra.mxu0 %v318
    %694 = vmatprep.subr.mxu0 %v315
    %695 = vmatpush1.msra.mxu0 %v314
    %696 = vmatprep.subr.mxu0 %v311
    %697 = vmatpush1.msra.mxu0 %v310
    %698 = vmatprep.subr.mxu0 %v307
    %699 = vmatpush1.msra.mxu0 %v306
    %700 = vmatprep.subr.mxu0 %v303
    %701 = vmatpush1.msra.mxu0 %v302
    %702 = vmatprep.subr.mxu0 %v299
    %703 = vmatpush1.msra.mxu0 %v298
    %704 = vmatprep.subr.mxu0 %v295
    %705 = vmatpush1.msra.mxu0 %v294
    %706 = vmatprep.subr.mxu0 %v291
    %707 = vmatpush1.msra.mxu0 %v290
    %708 = vmatprep.subr.mxu0 %v287
    %709 = vmatpush1.msra.mxu0 %v286
    %710 = vmatprep.subr.mxu0 %v283
    %711 = vmatpush1.msra.mxu0 %v282
    %712 = vmatprep.subr.mxu0 %v279
    %713 = vmatpush1.msra.mxu0 %v278
    %714 = vmatprep.subr.mxu0 %v275
    %715 = vmatpush1.msra.mxu0 %v274
    %716 = vmatprep.subr.mxu0 %v271
    %717 = vmatpush1.msra.mxu0 %v270
    %718 = vmatprep.subr.mxu0 %v267
    %719 = vmatpush1.msra.mxu0 %v266
    %720 = vmatprep.subr.mxu0 %v263
    %721 = vmatpush1.msra.mxu0 %v262
    %722 = vmatprep.subr.mxu0 %v259
    %723 = vmatpush1.msra.mxu0 %v258
    %724 = vmatprep.subr.mxu0 0.0
    %725 = vmatpush2.msra.mxu0 0.0
    %726 = vmatprep.subr.mxu0 0.0
    %727 = vmatpush2.msra.mxu0 0.0
    %728 = vmatprep.subr.mxu0 0.0
    %729 = vmatpush2.msra.mxu0 0.0
    %730 = vmatprep.subr.mxu0 0.0
    %731 = vmatpush2.msra.mxu0 0.0
    %732 = vmatprep.subr.mxu0 0.0
    %733 = vmatpush2.msra.mxu0 0.0
    %734 = vmatprep.subr.mxu0 0.0
    %735 = vmatpush2.msra.mxu0 0.0
    %736 = vmatprep.subr.mxu0 0.0
    %737 = vmatpush2.msra.mxu0 0.0
    %738 = vmatprep.subr.mxu0 0.0
    %739 = vmatpush2.msra.mxu0 0.0
    %740 = vmatprep.subr.mxu0 0.0
    %741 = vmatpush2.msra.mxu0 0.0
    %742 = vmatprep.subr.mxu0 0.0
    %743 = vmatpush2.msra.mxu0 0.0
    %744 = vmatprep.subr.mxu0 0.0
    %745 = vmatpush2.msra.mxu0 0.0
    %746 = vmatprep.subr.mxu0 0.0
    %747 = vmatpush2.msra.mxu0 0.0
    %748 = vmatprep.subr.mxu0 0.0
    %749 = vmatpush2.msra.mxu0 0.0
    %750 = vmatprep.subr.mxu0 0.0
    %751 = vmatpush2.msra.mxu0 0.0
    %752 = vmatprep.subr.mxu0 0.0
    %753 = vmatpush2.msra.mxu0 0.0
    %754 = vmatprep.subr.mxu0 0.0
    %755 = vmatpush2.msra.mxu0 0.0
    %756 = vmatprep.mubr.f32.mxu0 0.0
    %757 = vmatmul.mubr.f32.gmra.mxu0 %v690
    %v758 = vpop.f32.mrf.mxu0
    %v759 = vadd.f32 0.0, %v758
    %v760 = vpop.f32.mrf.mxu0
    %v761 = vadd.f32 0.0, %v760
    %762 = vdwg.mxu0
    %763 = vmatprep.subr.mxu0 %v321
    %764 = vmatpush1.msra.mxu0 %v320
    %765 = vmatprep.subr.mxu0 %v317
    %766 = vmatpush1.msra.mxu0 %v316
    %767 = vmatprep.subr.mxu0 %v313
    %768 = vmatpush1.msra.mxu0 %v312
    %769 = vmatprep.subr.mxu0 %v309
    %770 = vmatpush1.msra.mxu0 %v308
    %771 = vmatprep.subr.mxu0 %v305
    %772 = vmatpush1.msra.mxu0 %v304
    %773 = vmatprep.subr.mxu0 %v301
    %774 = vmatpush1.msra.mxu0 %v300
    %775 = vmatprep.subr.mxu0 %v297
    %776 = vmatpush1.msra.mxu0 %v296
    %777 = vmatprep.subr.mxu0 %v293
    %778 = vmatpush1.msra.mxu0 %v292
    %779 = vmatprep.subr.mxu0 %v289
    %780 = vmatpush1.msra.mxu0 %v288
    %781 = vmatprep.subr.mxu0 %v285
    %782 = vmatpush1.msra.mxu0 %v284
    %783 = vmatprep.subr.mxu0 %v281
    %784 = vmatpush1.msra.mxu0 %v280
    %785 = vmatprep.subr.mxu0 %v277
    %786 = vmatpush1.msra.mxu0 %v276
    %787 = vmatprep.subr.mxu0 %v273
    %788 = vmatpush1.msra.mxu0 %v272
    %789 = vmatprep.subr.mxu0 %v269
    %790 = vmatpush1.msra.mxu0 %v268
    %791 = vmatprep.subr.mxu0 %v265
    %792 = vmatpush1.msra.mxu0 %v264
    %793 = vmatprep.subr.mxu0 %v261
    %794 = vmatpush1.msra.mxu0 %v260
    %795 = vmatprep.subr.mxu0 0.0
    %796 = vmatpush2.msra.mxu0 0.0
    %797 = vmatprep.subr.mxu0 0.0
    %798 = vmatpush2.msra.mxu0 0.0
    %799 = vmatprep.subr.mxu0 0.0
    %800 = vmatpush2.msra.mxu0 0.0
    %801 = vmatprep.subr.mxu0 0.0
    %802 = vmatpush2.msra.mxu0 0.0
    %803 = vmatprep.subr.mxu0 0.0
    %804 = vmatpush2.msra.mxu0 0.0
    %805 = vmatprep.subr.mxu0 0.0
    %806 = vmatpush2.msra.mxu0 0.0
    %807 = vmatprep.subr.mxu0 0.0
    %808 = vmatpush2.msra.mxu0 0.0
    %809 = vmatprep.subr.mxu0 0.0
    %810 = vmatpush2.msra.mxu0 0.0
    %811 = vmatprep.subr.mxu0 0.0
    %812 = vmatpush2.msra.mxu0 0.0
    %813 = vmatprep.subr.mxu0 0.0
    %814 = vmatpush2.msra.mxu0 0.0
    %815 = vmatprep.subr.mxu0 0.0
    %816 = vmatpush2.msra.mxu0 0.0
    %817 = vmatprep.subr.mxu0 0.0
    %818 = vmatpush2.msra.mxu0 0.0
    %819 = vmatprep.subr.mxu0 0.0
    %820 = vmatpush2.msra.mxu0 0.0
    %821 = vmatprep.subr.mxu0 0.0
    %822 = vmatpush2.msra.mxu0 0.0
    %823 = vmatprep.subr.mxu0 0.0
    %824 = vmatpush2.msra.mxu0 0.0
    %825 = vmatprep.subr.mxu0 0.0
    %826 = vmatpush2.msra.mxu0 0.0
    %827 = vmatprep.mubr.f32.mxu0 0.0
    %828 = vmatmul.mubr.f32.gmra.mxu0 %v690
    %v829 = vpop.f32.mrf.mxu0
    %v830 = vadd.f32 0.0, %v829
    %v831 = vpop.f32.mrf.mxu0
    %v832 = vadd.f32 0.0, %v831
    %833 = vdwg.mxu0
    %v838 = vrot.slane %v759, 4
    %v839 = vrot.slane %v761, 4
    %v840 = vrot.slane %v830, 4
    %v841 = vrot.slane %v832, 4
    %v846 = vadd.f32 %v685, %v838
    %v847 = vadd.f32 %v686, %v839
    %v848 = vadd.f32 %v687, %v840
    %v849 = vadd.f32 %v688, %v841
    %v850 = vxor.u32 %v846, 2147483648
    %v851 = vmul.f32 %v850, 1.442695
    %v852 = vpow.pop %v851
    %v853 = vadd.f32 %v852, 1.0
    %v854 = vrcp.pop %v853
    %v855 = vmul.f32 1.0, %v854
    %v856 = vxor.u32 %v847, 2147483648
    %v857 = vmul.f32 %v856, 1.442695
    %v858 = vpow.pop %v857
    %v859 = vadd.f32 %v858, 1.0
    %v860 = vrcp.pop %v859
    %v861 = vmul.f32 1.0, %v860
    %v862 = vtanh.pop %v848
    %v863 = vxor.u32 %v849, 2147483648
    %v864 = vmul.f32 %v863, 1.442695
    %v865 = vpow.pop %v864
    %v866 = vadd.f32 %v865, 1.0
    %v867 = vrcp.pop %v866
    %v868 = vmul.f32 1.0, %v867
    %v870 = vrot.slane %v682, 6
    %v872 = vmul.f32 %v861, %v870
    %v873 = vmul.f32 %v855, %v862
    %v874 = vadd.f32 %v872, %v873
    %v875 = vtanh.pop %v874
    %v876 = vmul.f32 %v868, %v875
    %v877 = vld [vmem:[#allocation2] sm:$0xc0]
    %v878 = vld [vmem:[#allocation2 + $0x8] sm:$0xc0]
    %v879 = vld [vmem:[#allocation2 + $0x10] sm:$0xc0]
    %v880 = vld [vmem:[#allocation2 + $0x18] sm:$0xc0]
    %v882 = vrot.slane %v876, 4
    %884 = vmatprep.subr.mxu0 %v319
    %885 = vmatpush1.msra.mxu0 %v318
    %886 = vmatprep.subr.mxu0 %v315
    %887 = vmatpush1.msra.mxu0 %v314
    %888 = vmatprep.subr.mxu0 %v311
    %889 = vmatpush1.msra.mxu0 %v310
    %890 = vmatprep.subr.mxu0 %v307
    %891 = vmatpush1.msra.mxu0 %v306
    %892 = vmatprep.subr.mxu0 %v303
    %893 = vmatpush1.msra.mxu0 %v302
    %894 = vmatprep.subr.mxu0 %v299
    %895 = vmatpush1.msra.mxu0 %v298
    %896 = vmatprep.subr.mxu0 %v295
    %897 = vmatpush1.msra.mxu0 %v294
    %898 = vmatprep.subr.mxu0 %v291
    %899 = vmatpush1.msra.mxu0 %v290
    %900 = vmatprep.subr.mxu0 %v287
    %901 = vmatpush1.msra.mxu0 %v286
    %902 = vmatprep.subr.mxu0 %v283
    %903 = vmatpush1.msra.mxu0 %v282
    %904 = vmatprep.subr.mxu0 %v279
    %905 = vmatpush1.msra.mxu0 %v278
    %906 = vmatprep.subr.mxu0 %v275
    %907 = vmatpush1.msra.mxu0 %v274
    %908 = vmatprep.subr.mxu0 %v271
    %909 = vmatpush1.msra.mxu0 %v270
    %910 = vmatprep.subr.mxu0 %v267
    %911 = vmatpush1.msra.mxu0 %v266
    %912 = vmatprep.subr.mxu0 %v263
    %913 = vmatpush1.msra.mxu0 %v262
    %914 = vmatprep.subr.mxu0 %v259
    %915 = vmatpush1.msra.mxu0 %v258
    %916 = vmatprep.subr.mxu0 0.0
    %917 = vmatpush2.msra.mxu0 0.0
    %918 = vmatprep.subr.mxu0 0.0
    %919 = vmatpush2.msra.mxu0 0.0
    %920 = vmatprep.subr.mxu0 0.0
    %921 = vmatpush2.msra.mxu0 0.0
    %922 = vmatprep.subr.mxu0 0.0
    %923 = vmatpush2.msra.mxu0 0.0
    %924 = vmatprep.subr.mxu0 0.0
    %925 = vmatpush2.msra.mxu0 0.0
    %926 = vmatprep.subr.mxu0 0.0
    %927 = vmatpush2.msra.mxu0 0.0
    %928 = vmatprep.subr.mxu0 0.0
    %929 = vmatpush2.msra.mxu0 0.0
    %930 = vmatprep.subr.mxu0 0.0
    %931 = vmatpush2.msra.mxu0 0.0
    %932 = vmatprep.subr.mxu0 0.0
    %933 = vmatpush2.msra.mxu0 0.0
    %934 = vmatprep.subr.mxu0 0.0
    %935 = vmatpush2.msra.mxu0 0.0
    %936 = vmatprep.subr.mxu0 0.0
    %937 = vmatpush2.msra.mxu0 0.0
    %938 = vmatprep.subr.mxu0 0.0
    %939 = vmatpush2.msra.mxu0 0.0
    %940 = vmatprep.subr.mxu0 0.0
    %941 = vmatpush2.msra.mxu0 0.0
    %942 = vmatprep.subr.mxu0 0.0
    %943 = vmatpush2.msra.mxu0 0.0
    %944 = vmatprep.subr.mxu0 0.0
    %945 = vmatpush2.msra.mxu0 0.0
    %946 = vmatprep.subr.mxu0 0.0
    %947 = vmatpush2.msra.mxu0 0.0
    %948 = vmatprep.mubr.f32.mxu0 0.0
    %949 = vmatmul.mubr.f32.gmra.mxu0 %v882
    %v950 = vpop.f32.mrf.mxu0
    %v951 = vadd.f32 0.0, %v950
    %v952 = vpop.f32.mrf.mxu0
    %v953 = vadd.f32 0.0, %v952
    %954 = vdwg.mxu0
    %955 = vmatprep.subr.mxu0 %v321
    %956 = vmatpush1.msra.mxu0 %v320
    %957 = vmatprep.subr.mxu0 %v317
    %958 = vmatpush1.msra.mxu0 %v316
    %959 = vmatprep.subr.mxu0 %v313
    %960 = vmatpush1.msra.mxu0 %v312
    %961 = vmatprep.subr.mxu0 %v309
    %962 = vmatpush1.msra.mxu0 %v308
    %963 = vmatprep.subr.mxu0 %v305
    %964 = vmatpush1.msra.mxu0 %v304
    %965 = vmatprep.subr.mxu0 %v301
    %966 = vmatpush1.msra.mxu0 %v300
    %967 = vmatprep.subr.mxu0 %v297
    %968 = vmatpush1.msra.mxu0 %v296
    %969 = vmatprep.subr.mxu0 %v293
    %970 = vmatpush1.msra.mxu0 %v292
    %971 = vmatprep.subr.mxu0 %v289
    %972 = vmatpush1.msra.mxu0 %v288
    %973 = vmatprep.subr.mxu0 %v285
    %974 = vmatpush1.msra.mxu0 %v284
    %975 = vmatprep.subr.mxu0 %v281
    %976 = vmatpush1.msra.mxu0 %v280
    %977 = vmatprep.subr.mxu0 %v277
    %978 = vmatpush1.msra.mxu0 %v276
    %979 = vmatprep.subr.mxu0 %v273
    %980 = vmatpush1.msra.mxu0 %v272
    %981 = vmatprep.subr.mxu0 %v269
    %982 = vmatpush1.msra.mxu0 %v268
    %983 = vmatprep.subr.mxu0 %v265
    %984 = vmatpush1.msra.mxu0 %v264
    %985 = vmatprep.subr.mxu0 %v261
    %986 = vmatpush1.msra.mxu0 %v260
    %987 = vmatprep.subr.mxu0 0.0
    %988 = vmatpush2.msra.mxu0 0.0
    %989 = vmatprep.subr.mxu0 0.0
    %990 = vmatpush2.msra.mxu0 0.0
    %991 = vmatprep.subr.mxu0 0.0
    %992 = vmatpush2.msra.mxu0 0.0
    %993 = vmatprep.subr.mxu0 0.0
    %994 = vmatpush2.msra.mxu0 0.0
    %995 = vmatprep.subr.mxu0 0.0
    %996 = vmatpush2.msra.mxu0 0.0
    %997 = vmatprep.subr.mxu0 0.0
    %998 = vmatpush2.msra.mxu0 0.0
    %999 = vmatprep.subr.mxu0 0.0
    %1000 = vmatpush2.msra.mxu0 0.0
    %1001 = vmatprep.subr.mxu0 0.0
    %1002 = vmatpush2.msra.mxu0 0.0
    %1003 = vmatprep.subr.mxu0 0.0
    %1004 = vmatpush2.msra.mxu0 0.0
    %1005 = vmatprep.subr.mxu0 0.0
    %1006 = vmatpush2.msra.mxu0 0.0
    %1007 = vmatprep.subr.mxu0 0.0
    %1008 = vmatpush2.msra.mxu0 0.0
    %1009 = vmatprep.subr.mxu0 0.0
    %1010 = vmatpush2.msra.mxu0 0.0
    %1011 = vmatprep.subr.mxu0 0.0
    %1012 = vmatpush2.msra.mxu0 0.0
    %1013 = vmatprep.subr.mxu0 0.0
    %1014 = vmatpush2.msra.mxu0 0.0
    %1015 = vmatprep.subr.mxu0 0.0
    %1016 = vmatpush2.msra.mxu0 0.0
    %1017 = vmatprep.subr.mxu0 0.0
    %1018 = vmatpush2.msra.mxu0 0.0
    %1019 = vmatprep.mubr.f32.mxu0 0.0
    %1020 = vmatmul.mubr.f32.gmra.mxu0 %v882
    %v1021 = vpop.f32.mrf.mxu0
    %v1022 = vadd.f32 0.0, %v1021
    %v1023 = vpop.f32.mrf.mxu0
    %v1024 = vadd.f32 0.0, %v1023
    %1025 = vdwg.mxu0
    %v1030 = vrot.slane %v951, 2
    %v1031 = vrot.slane %v953, 2
    %v1032 = vrot.slane %v1022, 2
    %v1033 = vrot.slane %v1024, 2
    %v1038 = vadd.f32 %v877, %v1030
    %v1039 = vadd.f32 %v878, %v1031
    %v1040 = vadd.f32 %v879, %v1032
    %v1041 = vadd.f32 %v880, %v1033
    %v1042 = vxor.u32 %v1038, 2147483648
    %v1043 = vmul.f32 %v1042, 1.442695
    %v1044 = vpow.pop %v1043
    %v1045 = vadd.f32 %v1044, 1.0
    %v1046 = vrcp.pop %v1045
    %v1047 = vmul.f32 1.0, %v1046
    %v1048 = vxor.u32 %v1039, 2147483648
    %v1049 = vmul.f32 %v1048, 1.442695
    %v1050 = vpow.pop %v1049
    %v1051 = vadd.f32 %v1050, 1.0
    %v1052 = vrcp.pop %v1051
    %v1053 = vmul.f32 1.0, %v1052
    %v1054 = vtanh.pop %v1040
    %v1055 = vxor.u32 %v1041, 2147483648
    %v1056 = vmul.f32 %v1055, 1.442695
    %v1057 = vpow.pop %v1056
    %v1058 = vadd.f32 %v1057, 1.0
    %v1059 = vrcp.pop %v1058
    %v1060 = vmul.f32 1.0, %v1059
    %v1062 = vrot.slane %v874, 6
    %v1064 = vmul.f32 %v1053, %v1062
    %v1065 = vmul.f32 %v1047, %v1054
    %v1066 = vadd.f32 %v1064, %v1065
    %v1067 = vtanh.pop %v1066
    %v1068 = vmul.f32 %v1060, %v1067
    %v1069 = vld [vmem:[#allocation2 + $0x20] sm:$0x3]
    %v1070 = vld [vmem:[#allocation2 + $0x28] sm:$0x3]
    %v1071 = vld [vmem:[#allocation2 + $0x30] sm:$0x3]
    %v1072 = vld [vmem:[#allocation2 + $0x38] sm:$0x3]
    %v1074 = vrot.slane %v1068, 6
    %1076 = vmatprep.subr.mxu0 %v319
    %1077 = vmatpush1.msra.mxu0 %v318
    %1078 = vmatprep.subr.mxu0 %v315
    %1079 = vmatpush1.msra.mxu0 %v314
    %1080 = vmatprep.subr.mxu0 %v311
    %1081 = vmatpush1.msra.mxu0 %v310
    %1082 = vmatprep.subr.mxu0 %v307
    %1083 = vmatpush1.msra.mxu0 %v306
    %1084 = vmatprep.subr.mxu0 %v303
    %1085 = vmatpush1.msra.mxu0 %v302
    %1086 = vmatprep.subr.mxu0 %v299
    %1087 = vmatpush1.msra.mxu0 %v298
    %1088 = vmatprep.subr.mxu0 %v295
    %1089 = vmatpush1.msra.mxu0 %v294
    %1090 = vmatprep.subr.mxu0 %v291
    %1091 = vmatpush1.msra.mxu0 %v290
    %1092 = vmatprep.subr.mxu0 %v287
    %1093 = vmatpush1.msra.mxu0 %v286
    %1094 = vmatprep.subr.mxu0 %v283
    %1095 = vmatpush1.msra.mxu0 %v282
    %1096 = vmatprep.subr.mxu0 %v279
    %1097 = vmatpush1.msra.mxu0 %v278
    %1098 = vmatprep.subr.mxu0 %v275
    %1099 = vmatpush1.msra.mxu0 %v274
    %1100 = vmatprep.subr.mxu0 %v271
    %1101 = vmatpush1.msra.mxu0 %v270
    %1102 = vmatprep.subr.mxu0 %v267
    %1103 = vmatpush1.msra.mxu0 %v266
    %1104 = vmatprep.subr.mxu0 %v263
    %1105 = vmatpush1.msra.mxu0 %v262
    %1106 = vmatprep.subr.mxu0 %v259
    %1107 = vmatpush1.msra.mxu0 %v258
    %1108 = vmatprep.subr.mxu0 0.0
    %1109 = vmatpush2.msra.mxu0 0.0
    %1110 = vmatprep.subr.mxu0 0.0
    %1111 = vmatpush2.msra.mxu0 0.0
    %1112 = vmatprep.subr.mxu0 0.0
    %1113 = vmatpush2.msra.mxu0 0.0
    %1114 = vmatprep.subr.mxu0 0.0
    %1115 = vmatpush2.msra.mxu0 0.0
    %1116 = vmatprep.subr.mxu0 0.0
    %1117 = vmatpush2.msra.mxu0 0.0
    %1118 = vmatprep.subr.mxu0 0.0
    %1119 = vmatpush2.msra.mxu0 0.0
    %1120 = vmatprep.subr.mxu0 0.0
    %1121 = vmatpush2.msra.mxu0 0.0
    %1122 = vmatprep.subr.mxu0 0.0
    %1123 = vmatpush2.msra.mxu0 0.0
    %1124 = vmatprep.subr.mxu0 0.0
    %1125 = vmatpush2.msra.mxu0 0.0
    %1126 = vmatprep.subr.mxu0 0.0
    %1127 = vmatpush2.msra.mxu0 0.0
    %1128 = vmatprep.subr.mxu0 0.0
    %1129 = vmatpush2.msra.mxu0 0.0
    %1130 = vmatprep.subr.mxu0 0.0
    %1131 = vmatpush2.msra.mxu0 0.0
    %1132 = vmatprep.subr.mxu0 0.0
    %1133 = vmatpush2.msra.mxu0 0.0
    %1134 = vmatprep.subr.mxu0 0.0
    %1135 = vmatpush2.msra.mxu0 0.0
    %1136 = vmatprep.subr.mxu0 0.0
    %1137 = vmatpush2.msra.mxu0 0.0
    %1138 = vmatprep.subr.mxu0 0.0
    %1139 = vmatpush2.msra.mxu0 0.0
    %1140 = vmatprep.mubr.f32.mxu0 0.0
    %1141 = vmatmul.mubr.f32.gmra.mxu0 %v1074
    %v1142 = vpop.f32.mrf.mxu0
    %v1143 = vadd.f32 0.0, %v1142
    %v1144 = vpop.f32.mrf.mxu0
    %v1145 = vadd.f32 0.0, %v1144
    %1146 = vdwg.mxu0
    %1147 = vmatprep.subr.mxu0 %v321
    %1148 = vmatpush1.msra.mxu0 %v320
    %1149 = vmatprep.subr.mxu0 %v317
    %1150 = vmatpush1.msra.mxu0 %v316
    %1151 = vmatprep.subr.mxu0 %v313
    %1152 = vmatpush1.msra.mxu0 %v312
    %1153 = vmatprep.subr.mxu0 %v309
    %1154 = vmatpush1.msra.mxu0 %v308
    %1155 = vmatprep.subr.mxu0 %v305
    %1156 = vmatpush1.msra.mxu0 %v304
    %1157 = vmatprep.subr.mxu0 %v301
    %1158 = vmatpush1.msra.mxu0 %v300
    %1159 = vmatprep.subr.mxu0 %v297
    %1160 = vmatpush1.msra.mxu0 %v296
    %1161 = vmatprep.subr.mxu0 %v293
    %1162 = vmatpush1.msra.mxu0 %v292
    %1163 = vmatprep.subr.mxu0 %v289
    %1164 = vmatpush1.msra.mxu0 %v288
    %1165 = vmatprep.subr.mxu0 %v285
    %1166 = vmatpush1.msra.mxu0 %v284
    %1167 = vmatprep.subr.mxu0 %v281
    %1168 = vmatpush1.msra.mxu0 %v280
    %1169 = vmatprep.subr.mxu0 %v277
    %1170 = vmatpush1.msra.mxu0 %v276
    %1171 = vmatprep.subr.mxu0 %v273
    %1172 = vmatpush1.msra.mxu0 %v272
    %1173 = vmatprep.subr.mxu0 %v269
    %1174 = vmatpush1.msra.mxu0 %v268
    %1175 = vmatprep.subr.mxu0 %v265
    %1176 = vmatpush1.msra.mxu0 %v264
    %1177 = vmatprep.subr.mxu0 %v261
    %1178 = vmatpush1.msra.mxu0 %v260
    %1179 = vmatprep.subr.mxu0 0.0
    %1180 = vmatpush2.msra.mxu0 0.0
    %1181 = vmatprep.subr.mxu0 0.0
    %1182 = vmatpush2.msra.mxu0 0.0
    %1183 = vmatprep.subr.mxu0 0.0
    %1184 = vmatpush2.msra.mxu0 0.0
    %1185 = vmatprep.subr.mxu0 0.0
    %1186 = vmatpush2.msra.mxu0 0.0
    %1187 = vmatprep.subr.mxu0 0.0
    %1188 = vmatpush2.msra.mxu0 0.0
    %1189 = vmatprep.subr.mxu0 0.0
    %1190 = vmatpush2.msra.mxu0 0.0
    %1191 = vmatprep.subr.mxu0 0.0
    %1192 = vmatpush2.msra.mxu0 0.0
    %1193 = vmatprep.subr.mxu0 0.0
    %1194 = vmatpush2.msra.mxu0 0.0
    %1195 = vmatprep.subr.mxu0 0.0
    %1196 = vmatpush2.msra.mxu0 0.0
    %1197 = vmatprep.subr.mxu0 0.0
    %1198 = vmatpush2.msra.mxu0 0.0
    %1199 = vmatprep.subr.mxu0 0.0
    %1200 = vmatpush2.msra.mxu0 0.0
    %1201 = vmatprep.subr.mxu0 0.0
    %1202 = vmatpush2.msra.mxu0 0.0
    %1203 = vmatprep.subr.mxu0 0.0
    %1204 = vmatpush2.msra.mxu0 0.0
    %1205 = vmatprep.subr.mxu0 0.0
    %1206 = vmatpush2.msra.mxu0 0.0
    %1207 = vmatprep.subr.mxu0 0.0
    %1208 = vmatpush2.msra.mxu0 0.0
    %1209 = vmatprep.subr.mxu0 0.0
    %1210 = vmatpush2.msra.mxu0 0.0
    %1211 = vmatprep.mubr.f32.mxu0 0.0
    %1212 = vmatmul.mubr.f32.gmra.mxu0 %v1074
    %v1213 = vpop.f32.mrf.mxu0
    %v1214 = vadd.f32 0.0, %v1213
    %v1215 = vpop.f32.mrf.mxu0
    %v1216 = vadd.f32 0.0, %v1215
    %1217 = vdwg.mxu0
    %v1218 = vadd.f32 %v1069, %v1143
    %v1219 = vadd.f32 %v1070, %v1145
    %v1220 = vadd.f32 %v1071, %v1214
    %v1221 = vadd.f32 %v1072, %v1216
    %v1222 = vxor.u32 %v1218, 2147483648
    %v1223 = vmul.f32 %v1222, 1.442695
    %v1224 = vpow.pop %v1223
    %v1225 = vadd.f32 %v1224, 1.0
    %v1226 = vrcp.pop %v1225
    %v1227 = vmul.f32 1.0, %v1226
    %v1228 = vxor.u32 %v1219, 2147483648
    %v1229 = vmul.f32 %v1228, 1.442695
    %v1230 = vpow.pop %v1229
    %v1231 = vadd.f32 %v1230, 1.0
    %v1232 = vrcp.pop %v1231
    %v1233 = vmul.f32 1.0, %v1232
    %v1234 = vtanh.pop %v1220
    %v1235 = vxor.u32 %v1221, 2147483648
    %v1236 = vmul.f32 %v1235, 1.442695
    %v1237 = vpow.pop %v1236
    %v1238 = vadd.f32 %v1237, 1.0
    %v1239 = vrcp.pop %v1238
    %v1240 = vmul.f32 1.0, %v1239
    %v1242 = vrot.slane %v1066, 6
    %v1244 = vmul.f32 %v1233, %v1242
    %v1245 = vmul.f32 %v1227, %v1234
    %v1246 = vadd.f32 %v1244, %v1245
    %v1247 = vtanh.pop %v1246
    %v1248 = vmul.f32 %v1240, %v1247
    %v1249 = vld [vmem:[#allocation2 + $0x20] sm:$0xc]
    %v1250 = vld [vmem:[#allocation2 + $0x28] sm:$0xc]
    %v1251 = vld [vmem:[#allocation2 + $0x30] sm:$0xc]
    %v1252 = vld [vmem:[#allocation2 + $0x38] sm:$0xc]
    %1253 = vmatprep.subr.mxu0 %v319
    %1254 = vmatpush1.msra.mxu0 %v318
    %1255 = vmatprep.subr.mxu0 %v315
    %1256 = vmatpush1.msra.mxu0 %v314
    %1257 = vmatprep.subr.mxu0 %v311
    %1258 = vmatpush1.msra.mxu0 %v310
    %1259 = vmatprep.subr.mxu0 %v307
    %1260 = vmatpush1.msra.mxu0 %v306
    %1261 = vmatprep.subr.mxu0 %v303
    %1262 = vmatpush1.msra.mxu0 %v302
    %1263 = vmatprep.subr.mxu0 %v299
    %1264 = vmatpush1.msra.mxu0 %v298
    %1265 = vmatprep.subr.mxu0 %v295
    %1266 = vmatpush1.msra.mxu0 %v294
    %1267 = vmatprep.subr.mxu0 %v291
    %1268 = vmatpush1.msra.mxu0 %v290
    %1269 = vmatprep.subr.mxu0 %v287
    %1270 = vmatpush1.msra.mxu0 %v286
    %1271 = vmatprep.subr.mxu0 %v283
    %1272 = vmatpush1.msra.mxu0 %v282
    %1273 = vmatprep.subr.mxu0 %v279
    %1274 = vmatpush1.msra.mxu0 %v278
    %1275 = vmatprep.subr.mxu0 %v275
    %1276 = vmatpush1.msra.mxu0 %v274
    %1277 = vmatprep.subr.mxu0 %v271
    %1278 = vmatpush1.msra.mxu0 %v270
    %1279 = vmatprep.subr.mxu0 %v267
    %1280 = vmatpush1.msra.mxu0 %v266
    %1281 = vmatprep.subr.mxu0 %v263
    %1282 = vmatpush1.msra.mxu0 %v262
    %1283 = vmatprep.subr.mxu0 %v259
    %1284 = vmatpush1.msra.mxu0 %v258
    %1285 = vmatprep.subr.mxu0 0.0
    %1286 = vmatpush2.msra.mxu0 0.0
    %1287 = vmatprep.subr.mxu0 0.0
    %1288 = vmatpush2.msra.mxu0 0.0
    %1289 = vmatprep.subr.mxu0 0.0
    %1290 = vmatpush2.msra.mxu0 0.0
    %1291 = vmatprep.subr.mxu0 0.0
    %1292 = vmatpush2.msra.mxu0 0.0
    %1293 = vmatprep.subr.mxu0 0.0
    %1294 = vmatpush2.msra.mxu0 0.0
    %1295 = vmatprep.subr.mxu0 0.0
    %1296 = vmatpush2.msra.mxu0 0.0
    %1297 = vmatprep.subr.mxu0 0.0
    %1298 = vmatpush2.msra.mxu0 0.0
    %1299 = vmatprep.subr.mxu0 0.0
    %1300 = vmatpush2.msra.mxu0 0.0
    %1301 = vmatprep.subr.mxu0 0.0
    %1302 = vmatpush2.msra.mxu0 0.0
    %1303 = vmatprep.subr.mxu0 0.0
    %1304 = vmatpush2.msra.mxu0 0.0
    %1305 = vmatprep.subr.mxu0 0.0
    %1306 = vmatpush2.msra.mxu0 0.0
    %1307 = vmatprep.subr.mxu0 0.0
    %1308 = vmatpush2.msra.mxu0 0.0
    %1309 = vmatprep.subr.mxu0 0.0
    %1310 = vmatpush2.msra.mxu0 0.0
    %1311 = vmatprep.subr.mxu0 0.0
    %1312 = vmatpush2.msra.mxu0 0.0
    %1313 = vmatprep.subr.mxu0 0.0
    %1314 = vmatpush2.msra.mxu0 0.0
    %1315 = vmatprep.subr.mxu0 0.0
    %1316 = vmatpush2.msra.mxu0 0.0
    %1317 = vmatprep.mubr.f32.mxu0 0.0
    %1318 = vmatmul.mubr.f32.gmra.mxu0 %v1248
    %v1319 = vpop.f32.mrf.mxu0
    %v1320 = vadd.f32 0.0, %v1319
    %v1321 = vpop.f32.mrf.mxu0
    %v1322 = vadd.f32 0.0, %v1321
    %1323 = vdwg.mxu0
    %1324 = vmatprep.subr.mxu0 %v321
    %1325 = vmatpush1.msra.mxu0 %v320
    %1326 = vmatprep.subr.mxu0 %v317
    %1327 = vmatpush1.msra.mxu0 %v316
    %1328 = vmatprep.subr.mxu0 %v313
    %1329 = vmatpush1.msra.mxu0 %v312
    %1330 = vmatprep.subr.mxu0 %v309
    %1331 = vmatpush1.msra.mxu0 %v308
    %1332 = vmatprep.subr.mxu0 %v305
    %1333 = vmatpush1.msra.mxu0 %v304
    %1334 = vmatprep.subr.mxu0 %v301
    %1335 = vmatpush1.msra.mxu0 %v300
    %1336 = vmatprep.subr.mxu0 %v297
    %1337 = vmatpush1.msra.mxu0 %v296
    %1338 = vmatprep.subr.mxu0 %v293
    %1339 = vmatpush1.msra.mxu0 %v292
    %1340 = vmatprep.subr.mxu0 %v289
    %1341 = vmatpush1.msra.mxu0 %v288
    %1342 = vmatprep.subr.mxu0 %v285
    %1343 = vmatpush1.msra.mxu0 %v284
    %1344 = vmatprep.subr.mxu0 %v281
    %1345 = vmatpush1.msra.mxu0 %v280
    %1346 = vmatprep.subr.mxu0 %v277
    %1347 = vmatpush1.msra.mxu0 %v276
    %1348 = vmatprep.subr.mxu0 %v273
    %1349 = vmatpush1.msra.mxu0 %v272
    %1350 = vmatprep.subr.mxu0 %v269
    %1351 = vmatpush1.msra.mxu0 %v268
    %1352 = vmatprep.subr.mxu0 %v265
    %1353 = vmatpush1.msra.mxu0 %v264
    %1354 = vmatprep.subr.mxu0 %v261
    %1355 = vmatpush1.msra.mxu0 %v260
    %1356 = vmatprep.subr.mxu0 0.0
    %1357 = vmatpush2.msra.mxu0 0.0
    %1358 = vmatprep.subr.mxu0 0.0
    %1359 = vmatpush2.msra.mxu0 0.0
    %1360 = vmatprep.subr.mxu0 0.0
    %1361 = vmatpush2.msra.mxu0 0.0
    %1362 = vmatprep.subr.mxu0 0.0
    %1363 = vmatpush2.msra.mxu0 0.0
    %1364 = vmatprep.subr.mxu0 0.0
    %1365 = vmatpush2.msra.mxu0 0.0
    %1366 = vmatprep.subr.mxu0 0.0
    %1367 = vmatpush2.msra.mxu0 0.0
    %1368 = vmatprep.subr.mxu0 0.0
    %1369 = vmatpush2.msra.mxu0 0.0
    %1370 = vmatprep.subr.mxu0 0.0
    %1371 = vmatpush2.msra.mxu0 0.0
    %1372 = vmatprep.subr.mxu0 0.0
    %1373 = vmatpush2.msra.mxu0 0.0
    %1374 = vmatprep.subr.mxu0 0.0
    %1375 = vmatpush2.msra.mxu0 0.0
    %1376 = vmatprep.subr.mxu0 0.0
    %1377 = vmatpush2.msra.mxu0 0.0
    %1378 = vmatprep.subr.mxu0 0.0
    %1379 = vmatpush2.msra.mxu0 0.0
    %1380 = vmatprep.subr.mxu0 0.0
    %1381 = vmatpush2.msra.mxu0 0.0
    %1382 = vmatprep.subr.mxu0 0.0
    %1383 = vmatpush2.msra.mxu0 0.0
    %1384 = vmatprep.subr.mxu0 0.0
    %1385 = vmatpush2.msra.mxu0 0.0
    %1386 = vmatprep.subr.mxu0 0.0
    %1387 = vmatpush2.msra.mxu0 0.0
    %1388 = vmatprep.mubr.f32.mxu0 0.0
    %1389 = vmatmul.mubr.f32.gmra.mxu0 %v1248
    %v1390 = vpop.f32.mrf.mxu0
    %v1391 = vadd.f32 0.0, %v1390
    %v1392 = vpop.f32.mrf.mxu0
    %v1393 = vadd.f32 0.0, %v1392
    %1394 = vdwg.mxu0
    %v1399 = vrot.slane %v1320, 6
    %v1400 = vrot.slane %v1322, 6
    %v1401 = vrot.slane %v1391, 6
    %v1402 = vrot.slane %v1393, 6
    %v1407 = vadd.f32 %v1249, %v1399
    %v1408 = vadd.f32 %v1250, %v1400
    %v1409 = vadd.f32 %v1251, %v1401
    %v1410 = vadd.f32 %v1252, %v1402
    %v1411 = vxor.u32 %v1407, 2147483648
    %v1412 = vmul.f32 %v1411, 1.442695
    %v1413 = vpow.pop %v1412
    %v1414 = vadd.f32 %v1413, 1.0
    %v1415 = vrcp.pop %v1414
    %v1416 = vmul.f32 1.0, %v1415
    %v1417 = vxor.u32 %v1408, 2147483648
    %v1418 = vmul.f32 %v1417, 1.442695
    %v1419 = vpow.pop %v1418
    %v1420 = vadd.f32 %v1419, 1.0
    %v1421 = vrcp.pop %v1420
    %v1422 = vmul.f32 1.0, %v1421
    %v1423 = vtanh.pop %v1409
    %v1424 = vxor.u32 %v1410, 2147483648
    %v1425 = vmul.f32 %v1424, 1.442695
    %v1426 = vpow.pop %v1425
    %v1427 = vadd.f32 %v1426, 1.0
    %v1428 = vrcp.pop %v1427
    %v1429 = vmul.f32 1.0, %v1428
    %v1431 = vrot.slane %v1246, 6
    %v1433 = vmul.f32 %v1422, %v1431
    %v1434 = vmul.f32 %v1416, %v1423
    %v1435 = vadd.f32 %v1433, %v1434
    %v1436 = vtanh.pop %v1435
    %v1437 = vmul.f32 %v1429, %v1436
    %v1438 = vld [vmem:[#allocation2 + $0x20] sm:$0x30]
    %v1439 = vld [vmem:[#allocation2 + $0x28] sm:$0x30]
    %v1440 = vld [vmem:[#allocation2 + $0x30] sm:$0x30]
    %v1441 = vld [vmem:[#allocation2 + $0x38] sm:$0x30]
    %v1443 = vrot.slane %v1437, 2
    %1445 = vmatprep.subr.mxu0 %v319
    %1446 = vmatpush1.msra.mxu0 %v318
    %1447 = vmatprep.subr.mxu0 %v315
    %1448 = vmatpush1.msra.mxu0 %v314
    %1449 = vmatprep.subr.mxu0 %v311
    %1450 = vmatpush1.msra.mxu0 %v310
    %1451 = vmatprep.subr.mxu0 %v307
    %1452 = vmatpush1.msra.mxu0 %v306
    %1453 = vmatprep.subr.mxu0 %v303
    %1454 = vmatpush1.msra.mxu0 %v302
    %1455 = vmatprep.subr.mxu0 %v299
    %1456 = vmatpush1.msra.mxu0 %v298
    %1457 = vmatprep.subr.mxu0 %v295
    %1458 = vmatpush1.msra.mxu0 %v294
    %1459 = vmatprep.subr.mxu0 %v291
    %1460 = vmatpush1.msra.mxu0 %v290
    %1461 = vmatprep.subr.mxu0 %v287
    %1462 = vmatpush1.msra.mxu0 %v286
    %1463 = vmatprep.subr.mxu0 %v283
    %1464 = vmatpush1.msra.mxu0 %v282
    %1465 = vmatprep.subr.mxu0 %v279
    %1466 = vmatpush1.msra.mxu0 %v278
    %1467 = vmatprep.subr.mxu0 %v275
    %1468 = vmatpush1.msra.mxu0 %v274
    %1469 = vmatprep.subr.mxu0 %v271
    %1470 = vmatpush1.msra.mxu0 %v270
    %1471 = vmatprep.subr.mxu0 %v267
    %1472 = vmatpush1.msra.mxu0 %v266
    %1473 = vmatprep.subr.mxu0 %v263
    %1474 = vmatpush1.msra.mxu0 %v262
    %1475 = vmatprep.subr.mxu0 %v259
    %1476 = vmatpush1.msra.mxu0 %v258
    %1477 = vmatprep.subr.mxu0 0.0
    %1478 = vmatpush2.msra.mxu0 0.0
    %1479 = vmatprep.subr.mxu0 0.0
    %1480 = vmatpush2.msra.mxu0 0.0
    %1481 = vmatprep.subr.mxu0 0.0
    %1482 = vmatpush2.msra.mxu0 0.0
    %1483 = vmatprep.subr.mxu0 0.0
    %1484 = vmatpush2.msra.mxu0 0.0
    %1485 = vmatprep.subr.mxu0 0.0
    %1486 = vmatpush2.msra.mxu0 0.0
    %1487 = vmatprep.subr.mxu0 0.0
    %1488 = vmatpush2.msra.mxu0 0.0
    %1489 = vmatprep.subr.mxu0 0.0
    %1490 = vmatpush2.msra.mxu0 0.0
    %1491 = vmatprep.subr.mxu0 0.0
    %1492 = vmatpush2.msra.mxu0 0.0
    %1493 = vmatprep.subr.mxu0 0.0
    %1494 = vmatpush2.msra.mxu0 0.0
    %1495 = vmatprep.subr.mxu0 0.0
    %1496 = vmatpush2.msra.mxu0 0.0
    %1497 = vmatprep.subr.mxu0 0.0
    %1498 = vmatpush2.msra.mxu0 0.0
    %1499 = vmatprep.subr.mxu0 0.0
    %1500 = vmatpush2.msra.mxu0 0.0
    %1501 = vmatprep.subr.mxu0 0.0
    %1502 = vmatpush2.msra.mxu0 0.0
    %1503 = vmatprep.subr.mxu0 0.0
    %1504 = vmatpush2.msra.mxu0 0.0
    %1505 = vmatprep.subr.mxu0 0.0
    %1506 = vmatpush2.msra.mxu0 0.0
    %1507 = vmatprep.subr.mxu0 0.0
    %1508 = vmatpush2.msra.mxu0 0.0
    %1509 = vmatprep.mubr.f32.mxu0 0.0
    %1510 = vmatmul.mubr.f32.gmra.mxu0 %v1443
    %v1511 = vpop.f32.mrf.mxu0
    %v1512 = vadd.f32 0.0, %v1511
    %v1513 = vpop.f32.mrf.mxu0
    %v1514 = vadd.f32 0.0, %v1513
    %1515 = vdwg.mxu0
    %1516 = vmatprep.subr.mxu0 %v321
    %1517 = vmatpush1.msra.mxu0 %v320
    %1518 = vmatprep.subr.mxu0 %v317
    %1519 = vmatpush1.msra.mxu0 %v316
    %1520 = vmatprep.subr.mxu0 %v313
    %1521 = vmatpush1.msra.mxu0 %v312
    %1522 = vmatprep.subr.mxu0 %v309
    %1523 = vmatpush1.msra.mxu0 %v308
    %1524 = vmatprep.subr.mxu0 %v305
    %1525 = vmatpush1.msra.mxu0 %v304
    %1526 = vmatprep.subr.mxu0 %v301
    %1527 = vmatpush1.msra.mxu0 %v300
    %1528 = vmatprep.subr.mxu0 %v297
    %1529 = vmatpush1.msra.mxu0 %v296
    %1530 = vmatprep.subr.mxu0 %v293
    %1531 = vmatpush1.msra.mxu0 %v292
    %1532 = vmatprep.subr.mxu0 %v289
    %1533 = vmatpush1.msra.mxu0 %v288
    %1534 = vmatprep.subr.mxu0 %v285
    %1535 = vmatpush1.msra.mxu0 %v284
    %1536 = vmatprep.subr.mxu0 %v281
    %1537 = vmatpush1.msra.mxu0 %v280
    %1538 = vmatprep.subr.mxu0 %v277
    %1539 = vmatpush1.msra.mxu0 %v276
    %1540 = vmatprep.subr.mxu0 %v273
    %1541 = vmatpush1.msra.mxu0 %v272
    %1542 = vmatprep.subr.mxu0 %v269
    %1543 = vmatpush1.msra.mxu0 %v268
    %1544 = vmatprep.subr.mxu0 %v265
    %1545 = vmatpush1.msra.mxu0 %v264
    %1546 = vmatprep.subr.mxu0 %v261
    %1547 = vmatpush1.msra.mxu0 %v260
    %1548 = vmatprep.subr.mxu0 0.0
    %1549 = vmatpush2.msra.mxu0 0.0
    %1550 = vmatprep.subr.mxu0 0.0
    %1551 = vmatpush2.msra.mxu0 0.0
    %1552 = vmatprep.subr.mxu0 0.0
    %1553 = vmatpush2.msra.mxu0 0.0
    %1554 = vmatprep.subr.mxu0 0.0
    %1555 = vmatpush2.msra.mxu0 0.0
    %1556 = vmatprep.subr.mxu0 0.0
    %1557 = vmatpush2.msra.mxu0 0.0
    %1558 = vmatprep.subr.mxu0 0.0
    %1559 = vmatpush2.msra.mxu0 0.0
    %1560 = vmatprep.subr.mxu0 0.0
    %1561 = vmatpush2.msra.mxu0 0.0
    %1562 = vmatprep.subr.mxu0 0.0
    %1563 = vmatpush2.msra.mxu0 0.0
    %1564 = vmatprep.subr.mxu0 0.0
    %1565 = vmatpush2.msra.mxu0 0.0
    %1566 = vmatprep.subr.mxu0 0.0
    %1567 = vmatpush2.msra.mxu0 0.0
    %1568 = vmatprep.subr.mxu0 0.0
    %1569 = vmatpush2.msra.mxu0 0.0
    %1570 = vmatprep.subr.mxu0 0.0
    %1571 = vmatpush2.msra.mxu0 0.0
    %1572 = vmatprep.subr.mxu0 0.0
    %1573 = vmatpush2.msra.mxu0 0.0
    %1574 = vmatprep.subr.mxu0 0.0
    %1575 = vmatpush2.msra.mxu0 0.0
    %1576 = vmatprep.subr.mxu0 0.0
    %1577 = vmatpush2.msra.mxu0 0.0
    %1578 = vmatprep.subr.mxu0 0.0
    %1579 = vmatpush2.msra.mxu0 0.0
    %1580 = vmatprep.mubr.f32.mxu0 0.0
    %1581 = vmatmul.mubr.f32.gmra.mxu0 %v1443
    %v1582 = vpop.f32.mrf.mxu0
    %v1583 = vadd.f32 0.0, %v1582
    %v1584 = vpop.f32.mrf.mxu0
    %v1585 = vadd.f32 0.0, %v1584
    %1586 = vdwg.mxu0
    %v1591 = vrot.slane %v1512, 4
    %v1592 = vrot.slane %v1514, 4
    %v1593 = vrot.slane %v1583, 4
    %v1594 = vrot.slane %v1585, 4
    %v1599 = vadd.f32 %v1438, %v1591
    %v1600 = vadd.f32 %v1439, %v1592
    %v1601 = vadd.f32 %v1440, %v1593
    %v1602 = vadd.f32 %v1441, %v1594
    %v1603 = vxor.u32 %v1599, 2147483648
    %v1604 = vmul.f32 %v1603, 1.442695
    %v1605 = vpow.pop %v1604
    %v1606 = vadd.f32 %v1605, 1.0
    %v1607 = vrcp.pop %v1606
    %v1608 = vmul.f32 1.0, %v1607
    %v1609 = vxor.u32 %v1600, 2147483648
    %v1610 = vmul.f32 %v1609, 1.442695
    %v1611 = vpow.pop %v1610
    %v1612 = vadd.f32 %v1611, 1.0
    %v1613 = vrcp.pop %v1612
    %v1614 = vmul.f32 1.0, %v1613
    %v1615 = vtanh.pop %v1601
    %v1616 = vxor.u32 %v1602, 2147483648
    %v1617 = vmul.f32 %v1616, 1.442695
    %v1618 = vpow.pop %v1617
    %v1619 = vadd.f32 %v1618, 1.0
    %v1620 = vrcp.pop %v1619
    %v1621 = vmul.f32 1.0, %v1620
    %v1623 = vrot.slane %v1435, 6
    %v1625 = vmul.f32 %v1614, %v1623
    %v1626 = vmul.f32 %v1608, %v1615
    %v1627 = vadd.f32 %v1625, %v1626
    %v1628 = vtanh.pop %v1627
    %v1629 = vmul.f32 %v1621, %v1628
    %v1630 = vld [vmem:[#allocation2 + $0x20] sm:$0xc0]
    %v1631 = vld [vmem:[#allocation2 + $0x28] sm:$0xc0]
    %v1632 = vld [vmem:[#allocation2 + $0x30] sm:$0xc0]
    %v1633 = vld [vmem:[#allocation2 + $0x38] sm:$0xc0]
    %v1635 = vrot.slane %v1629, 4
    %1637 = vmatprep.subr.mxu0 %v319
    %1638 = vmatpush1.msra.mxu0 %v318
    %1639 = vmatprep.subr.mxu0 %v315
    %1640 = vmatpush1.msra.mxu0 %v314
    %1641 = vmatprep.subr.mxu0 %v311
    %1642 = vmatpush1.msra.mxu0 %v310
    %1643 = vmatprep.subr.mxu0 %v307
    %1644 = vmatpush1.msra.mxu0 %v306
    %1645 = vmatprep.subr.mxu0 %v303
    %1646 = vmatpush1.msra.mxu0 %v302
    %1647 = vmatprep.subr.mxu0 %v299
    %1648 = vmatpush1.msra.mxu0 %v298
    %1649 = vmatprep.subr.mxu0 %v295
    %1650 = vmatpush1.msra.mxu0 %v294
    %1651 = vmatprep.subr.mxu0 %v291
    %1652 = vmatpush1.msra.mxu0 %v290
    %1653 = vmatprep.subr.mxu0 %v287
    %1654 = vmatpush1.msra.mxu0 %v286
    %1655 = vmatprep.subr.mxu0 %v283
    %1656 = vmatpush1.msra.mxu0 %v282
    %1657 = vmatprep.subr.mxu0 %v279
    %1658 = vmatpush1.msra.mxu0 %v278
    %1659 = vmatprep.subr.mxu0 %v275
    %1660 = vmatpush1.msra.mxu0 %v274
    %1661 = vmatprep.subr.mxu0 %v271
    %1662 = vmatpush1.msra.mxu0 %v270
    %1663 = vmatprep.subr.mxu0 %v267
    %1664 = vmatpush1.msra.mxu0 %v266
    %1665 = vmatprep.subr.mxu0 %v263
    %1666 = vmatpush1.msra.mxu0 %v262
    %1667 = vmatprep.subr.mxu0 %v259
    %1668 = vmatpush1.msra.mxu0 %v258
    %1669 = vmatprep.subr.mxu0 0.0
    %1670 = vmatpush2.msra.mxu0 0.0
    %1671 = vmatprep.subr.mxu0 0.0
    %1672 = vmatpush2.msra.mxu0 0.0
    %1673 = vmatprep.subr.mxu0 0.0
    %1674 = vmatpush2.msra.mxu0 0.0
    %1675 = vmatprep.subr.mxu0 0.0
    %1676 = vmatpush2.msra.mxu0 0.0
    %1677 = vmatprep.subr.mxu0 0.0
    %1678 = vmatpush2.msra.mxu0 0.0
    %1679 = vmatprep.subr.mxu0 0.0
    %1680 = vmatpush2.msra.mxu0 0.0
    %1681 = vmatprep.subr.mxu0 0.0
    %1682 = vmatpush2.msra.mxu0 0.0
    %1683 = vmatprep.subr.mxu0 0.0
    %1684 = vmatpush2.msra.mxu0 0.0
    %1685 = vmatprep.subr.mxu0 0.0
    %1686 = vmatpush2.msra.mxu0 0.0
    %1687 = vmatprep.subr.mxu0 0.0
    %1688 = vmatpush2.msra.mxu0 0.0
    %1689 = vmatprep.subr.mxu0 0.0
    %1690 = vmatpush2.msra.mxu0 0.0
    %1691 = vmatprep.subr.mxu0 0.0
    %1692 = vmatpush2.msra.mxu0 0.0
    %1693 = vmatprep.subr.mxu0 0.0
    %1694 = vmatpush2.msra.mxu0 0.0
    %1695 = vmatprep.subr.mxu0 0.0
    %1696 = vmatpush2.msra.mxu0 0.0
    %1697 = vmatprep.subr.mxu0 0.0
    %1698 = vmatpush2.msra.mxu0 0.0
    %1699 = vmatprep.subr.mxu0 0.0
    %1700 = vmatpush2.msra.mxu0 0.0
    %1701 = vmatprep.mubr.f32.mxu0 0.0
    %1702 = vmatmul.mubr.f32.gmra.mxu0 %v1635
    %v1703 = vpop.f32.mrf.mxu0
    %v1704 = vadd.f32 0.0, %v1703
    %v1705 = vpop.f32.mrf.mxu0
    %v1706 = vadd.f32 0.0, %v1705
    %1707 = vdwg.mxu0
    %1708 = vmatprep.subr.mxu0 %v321
    %1709 = vmatpush1.msra.mxu0 %v320
    %1710 = vmatprep.subr.mxu0 %v317
    %1711 = vmatpush1.msra.mxu0 %v316
    %1712 = vmatprep.subr.mxu0 %v313
    %1713 = vmatpush1.msra.mxu0 %v312
    %1714 = vmatprep.subr.mxu0 %v309
    %1715 = vmatpush1.msra.mxu0 %v308
    %1716 = vmatprep.subr.mxu0 %v305
    %1717 = vmatpush1.msra.mxu0 %v304
    %1718 = vmatprep.subr.mxu0 %v301
    %1719 = vmatpush1.msra.mxu0 %v300
    %1720 = vmatprep.subr.mxu0 %v297
    %1721 = vmatpush1.msra.mxu0 %v296
    %1722 = vmatprep.subr.mxu0 %v293
    %1723 = vmatpush1.msra.mxu0 %v292
    %1724 = vmatprep.subr.mxu0 %v289
    %1725 = vmatpush1.msra.mxu0 %v288
    %1726 = vmatprep.subr.mxu0 %v285
    %1727 = vmatpush1.msra.mxu0 %v284
    %1728 = vmatprep.subr.mxu0 %v281
    %1729 = vmatpush1.msra.mxu0 %v280
    %1730 = vmatprep.subr.mxu0 %v277
    %1731 = vmatpush1.msra.mxu0 %v276
    %1732 = vmatprep.subr.mxu0 %v273
    %1733 = vmatpush1.msra.mxu0 %v272
    %1734 = vmatprep.subr.mxu0 %v269
    %1735 = vmatpush1.msra.mxu0 %v268
    %1736 = vmatprep.subr.mxu0 %v265
    %1737 = vmatpush1.msra.mxu0 %v264
    %1738 = vmatprep.subr.mxu0 %v261
    %1739 = vmatpush1.msra.mxu0 %v260
    %1740 = vmatprep.subr.mxu0 0.0
    %1741 = vmatpush2.msra.mxu0 0.0
    %1742 = vmatprep.subr.mxu0 0.0
    %1743 = vmatpush2.msra.mxu0 0.0
    %1744 = vmatprep.subr.mxu0 0.0
    %1745 = vmatpush2.msra.mxu0 0.0
    %1746 = vmatprep.subr.mxu0 0.0
    %1747 = vmatpush2.msra.mxu0 0.0
    %1748 = vmatprep.subr.mxu0 0.0
    %1749 = vmatpush2.msra.mxu0 0.0
    %1750 = vmatprep.subr.mxu0 0.0
    %1751 = vmatpush2.msra.mxu0 0.0
    %1752 = vmatprep.subr.mxu0 0.0
    %1753 = vmatpush2.msra.mxu0 0.0
    %1754 = vmatprep.subr.mxu0 0.0
    %1755 = vmatpush2.msra.mxu0 0.0
    %1756 = vmatprep.subr.mxu0 0.0
    %1757 = vmatpush2.msra.mxu0 0.0
    %1758 = vmatprep.subr.mxu0 0.0
    %1759 = vmatpush2.msra.mxu0 0.0
    %1760 = vmatprep.subr.mxu0 0.0
    %1761 = vmatpush2.msra.mxu0 0.0
    %1762 = vmatprep.subr.mxu0 0.0
    %1763 = vmatpush2.msra.mxu0 0.0
    %1764 = vmatprep.subr.mxu0 0.0
    %1765 = vmatpush2.msra.mxu0 0.0
    %1766 = vmatprep.subr.mxu0 0.0
    %1767 = vmatpush2.msra.mxu0 0.0
    %1768 = vmatprep.subr.mxu0 0.0
    %1769 = vmatpush2.msra.mxu0 0.0
    %1770 = vmatprep.subr.mxu0 0.0
    %1771 = vmatpush2.msra.mxu0 0.0
    %1772 = vmatprep.mubr.f32.mxu0 0.0
    %1773 = vmatmul.mubr.f32.gmra.mxu0 %v1635
    %v1774 = vpop.f32.mrf.mxu0
    %v1775 = vadd.f32 0.0, %v1774
    %v1776 = vpop.f32.mrf.mxu0
    %v1777 = vadd.f32 0.0, %v1776
    %1778 = vdwg.mxu0
    %v1783 = vrot.slane %v1704, 2
    %v1784 = vrot.slane %v1706, 2
    %v1785 = vrot.slane %v1775, 2
    %v1786 = vrot.slane %v1777, 2
    %v1791 = vadd.f32 %v1630, %v1783
    %v1792 = vadd.f32 %v1631, %v1784
    %v1793 = vadd.f32 %v1632, %v1785
    %v1794 = vadd.f32 %v1633, %v1786
    %v1795 = vxor.u32 %v1791, 2147483648
    %v1796 = vmul.f32 %v1795, 1.442695
    %v1797 = vpow.pop %v1796
    %v1798 = vadd.f32 %v1797, 1.0
    %v1799 = vrcp.pop %v1798
    %v1800 = vmul.f32 1.0, %v1799
    %v1801 = vxor.u32 %v1792, 2147483648
    %v1802 = vmul.f32 %v1801, 1.442695
    %v1803 = vpow.pop %v1802
    %v1804 = vadd.f32 %v1803, 1.0
    %v1805 = vrcp.pop %v1804
    %v1806 = vmul.f32 1.0, %v1805
    %v1807 = vtanh.pop %v1793
    %v1808 = vxor.u32 %v1794, 2147483648
    %v1809 = vmul.f32 %v1808, 1.442695
    %v1810 = vpow.pop %v1809
    %v1811 = vadd.f32 %v1810, 1.0
    %v1812 = vrcp.pop %v1811
    %v1813 = vmul.f32 1.0, %v1812
    %v1815 = vrot.slane %v1627, 6
    %v1817 = vmul.f32 %v1806, %v1815
    %v1818 = vmul.f32 %v1800, %v1807
    %v1819 = vadd.f32 %v1817, %v1818
    %v1820 = vtanh.pop %v1819
    %v1821 = vmul.f32 %v1813, %v1820
    %v1822 = vmax.f32 %v1821, 0.0
    %v1823 = vld [vmem:[%s4] sm:$0xff]
    %v1824 = vld [vmem:[%s4 + $0x8] sm:$0xff]
    %v1825 = vld [vmem:[%s4 + $0x10] sm:$0xff]
    %v1826 = vld [vmem:[%s4 + $0x18] sm:$0xff]
    %v1827 = vld [vmem:[%s4 + $0x20] sm:$0xff]
    %v1828 = vld [vmem:[%s4 + $0x28] sm:$0xff]
    %v1829 = vld [vmem:[%s4 + $0x30] sm:$0xff]
    %v1830 = vld [vmem:[%s4 + $0x38] sm:$0xff]
    %v1831 = vld [vmem:[%s4 + $0x40] sm:$0xff]
    %v1832 = vld [vmem:[%s4 + $0x48] sm:$0xff]
    %v1833 = vld [vmem:[%s4 + $0x50] sm:$0xff]
    %v1834 = vld [vmem:[%s4 + $0x58] sm:$0xff]
    %v1835 = vld [vmem:[%s4 + $0x60] sm:$0xff]
    %v1836 = vld [vmem:[%s4 + $0x68] sm:$0xff]
    %v1837 = vld [vmem:[%s4 + $0x70] sm:$0xff]
    %v1838 = vld [vmem:[%s4 + $0x78] sm:$0xff]
    %v1839 = vld [vmem:[%s5] sm:$0x1]
    %v1841 = vlaneseq
    %v1842 = vshrl.u32 %v1841, 7
    %v1843 = vsub.s32 0, %v1842
    %v1844 = vrot.slane %v1839, %v1843
    %v1847 = vrot.slane %v1822, 6
    %1849 = vmatprep.subr.mxu0 0.0
    %1850 = vmatpush1.msra.mxu0 %v1838
    %1851 = vmatprep.subr.mxu0 0.0
    %1852 = vmatpush1.msra.mxu0 %v1837
    %1853 = vmatprep.subr.mxu0 0.0
    %1854 = vmatpush1.msra.mxu0 %v1836
    %1855 = vmatprep.subr.mxu0 0.0
    %1856 = vmatpush1.msra.mxu0 %v1835
    %1857 = vmatprep.subr.mxu0 0.0
    %1858 = vmatpush1.msra.mxu0 %v1834
    %1859 = vmatprep.subr.mxu0 0.0
    %1860 = vmatpush1.msra.mxu0 %v1833
    %1861 = vmatprep.subr.mxu0 0.0
    %1862 = vmatpush1.msra.mxu0 %v1832
    %1863 = vmatprep.subr.mxu0 0.0
    %1864 = vmatpush1.msra.mxu0 %v1831
    %1865 = vmatprep.subr.mxu0 0.0
    %1866 = vmatpush1.msra.mxu0 %v1830
    %1867 = vmatprep.subr.mxu0 0.0
    %1868 = vmatpush1.msra.mxu0 %v1829
    %1869 = vmatprep.subr.mxu0 0.0
    %1870 = vmatpush1.msra.mxu0 %v1828
    %1871 = vmatprep.subr.mxu0 0.0
    %1872 = vmatpush1.msra.mxu0 %v1827
    %1873 = vmatprep.subr.mxu0 0.0
    %1874 = vmatpush1.msra.mxu0 %v1826
    %1875 = vmatprep.subr.mxu0 0.0
    %1876 = vmatpush1.msra.mxu0 %v1825
    %1877 = vmatprep.subr.mxu0 0.0
    %1878 = vmatpush1.msra.mxu0 %v1824
    %1879 = vmatprep.subr.mxu0 0.0
    %1880 = vmatpush1.msra.mxu0 %v1823
    %1881 = vmatprep.subr.mxu0 0.0
    %1882 = vmatpush2.msra.mxu0 0.0
    %1883 = vmatprep.subr.mxu0 0.0
    %1884 = vmatpush2.msra.mxu0 0.0
    %1885 = vmatprep.subr.mxu0 0.0
    %1886 = vmatpush2.msra.mxu0 0.0
    %1887 = vmatprep.subr.mxu0 0.0
    %1888 = vmatpush2.msra.mxu0 0.0
    %1889 = vmatprep.subr.mxu0 0.0
    %1890 = vmatpush2.msra.mxu0 0.0
    %1891 = vmatprep.subr.mxu0 0.0
    %1892 = vmatpush2.msra.mxu0 0.0
    %1893 = vmatprep.subr.mxu0 0.0
    %1894 = vmatpush2.msra.mxu0 0.0
    %1895 = vmatprep.subr.mxu0 0.0
    %1896 = vmatpush2.msra.mxu0 0.0
    %1897 = vmatprep.subr.mxu0 0.0
    %1898 = vmatpush2.msra.mxu0 0.0
    %1899 = vmatprep.subr.mxu0 0.0
    %1900 = vmatpush2.msra.mxu0 0.0
    %1901 = vmatprep.subr.mxu0 0.0
    %1902 = vmatpush2.msra.mxu0 0.0
    %1903 = vmatprep.subr.mxu0 0.0
    %1904 = vmatpush2.msra.mxu0 0.0
    %1905 = vmatprep.subr.mxu0 0.0
    %1906 = vmatpush2.msra.mxu0 0.0
    %1907 = vmatprep.subr.mxu0 0.0
    %1908 = vmatpush2.msra.mxu0 0.0
    %1909 = vmatprep.subr.mxu0 0.0
    %1910 = vmatpush2.msra.mxu0 0.0
    %1911 = vmatprep.subr.mxu0 0.0
    %1912 = vmatpush2.msra.mxu0 0.0
    %1913 = vmatprep.mubr.f32.mxu0 0.0
    %1914 = vmatmul.mubr.f32.gmra.mxu0 %v1847
    %v1915 = vpop.f32.mrf.mxu0
    %v1916 = vadd.f32 %v1844, %v1915
    %v1917 = vpop.f32.mrf.mxu0
    %1918 = vdwg.mxu0
    %v1919 = vmax.f32 %v1916, 0.0
    %v1920 = vld [vmem:[%s6] sm:$0xff]
    %v1921 = vld [vmem:[%s6 + $0x8] sm:$0xff]
    %v1922 = vld [vmem:[%s7] sm:$0x1]
    %v1924 = vlaneseq
    %v1925 = vshrl.u32 %v1924, 7
    %v1926 = vsub.s32 0, %v1925
    %v1927 = vrot.slane %v1922, %v1926
    %vm1929 = vcmask 130048
    %v1931 = vsel %vm1929, %v1919, 0
    %1933 = vmatprep.subr.mxu0 0.0
    %1934 = vmatpush1.msra.mxu0 0.0
    %1935 = vmatprep.subr.mxu0 0.0
    %1936 = vmatpush1.msra.mxu0 0.0
    %1937 = vmatprep.subr.mxu0 0.0
    %1938 = vmatpush1.msra.mxu0 0.0
    %1939 = vmatprep.subr.mxu0 0.0
    %1940 = vmatpush1.msra.mxu0 0.0
    %1941 = vmatprep.subr.mxu0 0.0
    %1942 = vmatpush1.msra.mxu0 0.0
    %1943 = vmatprep.subr.mxu0 0.0
    %1944 = vmatpush1.msra.mxu0 0.0
    %1945 = vmatprep.subr.mxu0 0.0
    %1946 = vmatpush1.msra.mxu0 0.0
    %1947 = vmatprep.subr.mxu0 0.0
    %1948 = vmatpush1.msra.mxu0 0.0
    %1949 = vmatprep.subr.mxu0 0.0
    %1950 = vmatpush1.msra.mxu0 0.0
    %1951 = vmatprep.subr.mxu0 0.0
    %1952 = vmatpush1.msra.mxu0 0.0
    %1953 = vmatprep.subr.mxu0 0.0
    %1954 = vmatpush1.msra.mxu0 0.0
    %1955 = vmatprep.subr.mxu0 0.0
    %1956 = vmatpush1.msra.mxu0 0.0
    %1957 = vmatprep.subr.mxu0 0.0
    %1958 = vmatpush1.msra.mxu0 0.0
    %1959 = vmatprep.subr.mxu0 0.0
    %1960 = vmatpush1.msra.mxu0 0.0
    %1961 = vmatprep.subr.mxu0 0.0
    %1962 = vmatpush1.msra.mxu0 %v1921
    %1963 = vmatprep.subr.mxu0 0.0
    %1964 = vmatpush1.msra.mxu0 %v1920
    %1965 = vmatprep.subr.mxu0 0.0
    %1966 = vmatpush2.msra.mxu0 0.0
    %1967 = vmatprep.subr.mxu0 0.0
    %1968 = vmatpush2.msra.mxu0 0.0
    %1969 = vmatprep.subr.mxu0 0.0
    %1970 = vmatpush2.msra.mxu0 0.0
    %1971 = vmatprep.subr.mxu0 0.0
    %1972 = vmatpush2.msra.mxu0 0.0
    %1973 = vmatprep.subr.mxu0 0.0
    %1974 = vmatpush2.msra.mxu0 0.0
    %1975 = vmatprep.subr.mxu0 0.0
    %1976 = vmatpush2.msra.mxu0 0.0
    %1977 = vmatprep.subr.mxu0 0.0
    %1978 = vmatpush2.msra.mxu0 0.0
    %1979 = vmatprep.subr.mxu0 0.0
    %1980 = vmatpush2.msra.mxu0 0.0
    %1981 = vmatprep.subr.mxu0 0.0
    %1982 = vmatpush2.msra.mxu0 0.0
    %1983 = vmatprep.subr.mxu0 0.0
    %1984 = vmatpush2.msra.mxu0 0.0
    %1985 = vmatprep.subr.mxu0 0.0
    %1986 = vmatpush2.msra.mxu0 0.0
    %1987 = vmatprep.subr.mxu0 0.0
    %1988 = vmatpush2.msra.mxu0 0.0
    %1989 = vmatprep.subr.mxu0 0.0
    %1990 = vmatpush2.msra.mxu0 0.0
    %1991 = vmatprep.subr.mxu0 0.0
    %1992 = vmatpush2.msra.mxu0 0.0
    %1993 = vmatprep.subr.mxu0 0.0
    %1994 = vmatpush2.msra.mxu0 0.0
    %1995 = vmatprep.subr.mxu0 0.0
    %1996 = vmatpush2.msra.mxu0 0.0
    %1997 = vmatprep.mubr.f32.mxu0 0.0
    %1998 = vmatmul.mubr.f32.gmra.mxu0 %v1931
    %v1999 = vpop.f32.mrf.mxu0
    %v2000 = vadd.f32 %v1927, %v1999
    %v2001 = vpop.f32.mrf.mxu0
    %2002 = vdwg.mxu0
    %vm2003 = vcmask 25600
    %2004 = vst.msk [vmem:[#allocation6] sm:$0x3] %vm2003, %v2000
    // Predicated region
    $region38: #{tpu_custom_call.1} parent=1 // pred_check
      _
    $region39: #{tpu_custom_call.1} parent=1 // pred_check_branch
      %2006 = sbr.rel (0) target = $region41
    $region40: #{tpu_custom_call.1} parent=1 // pred_region
      %s2008 = ssub.s32 32, 32
      %2009 = vsyncadd [#allocation5], %s2008
      %s2011 = sshll.u32 [#allocation6], 4
      %s2012 = int_to_ptr.vmem [resolvable:$true] %s2011
      %2014 = dma.vmem_to_hbm [thread:$0]  %s2012, 32, %s8, [#allocation5]
    $region41: #{tpu_custom_call.1} parent=1 // pred_fallthru
      _
    // Predicated region
    $region42: #{tpu_custom_call.1} parent=1 // pred_check
      _
    $region43: #{tpu_custom_call.1} parent=1 // pred_check_branch
      %2016 = sbr.rel (0) target = $region45
    $region44: #{tpu_custom_call.1} parent=1 // pred_region
      %2017 = dma.done [#allocation5], 32
    $region45: #{tpu_custom_call.1} parent=1 // pred_fallthru
      _
    %2018 = vsyncpa [#allocation4], 1
    %2019 = vsyncpa [#allocation5], 1

</llo_original>
